<compile_context>
chip_gen: v5e
topology: v5e:2x2
jax: 0.10.0
libtpu: 0.0.40
codegen_flags: <defaults>
</compile_context>

<pallas_src>
import math
import functools

import numpy as np
import jax
import jax.numpy as jnp
from jax.experimental import pallas as pl
from jax.experimental.pallas import tpu as pltpu


# MXU operand dtype: bf16 is the native MXU format on all current TPU
# generations (f32 is a multi-pass fallback).  Accumulation stays f32.
MXU_DTYPE = jnp.bfloat16

# Scoped-VMEM budget: 48 MiB is safe on v7x (64 MiB physical per core) and
# well above the 16/32 MiB scoped defaults on v5e/v6e.
# TODO(synk): raise toward 64-96 MiB on v5e/v6e (128 MiB physical) when tuning
# per-generation, and add pipeline_mode=pl.Buffered(3) on weight specs there.
VMEM_LIMIT = 48 * 1024 * 1024

# Tile preferences (largest divisor <= pref; full extent when the dim is small).
TM_LINEAR = 512   # rows for plain matmuls (multiple of 8)
TM_FUSED = 256    # rows for fused matmul+residual+LayerNorm (N is untiled)
TN_PREF = 512     # output columns (multiple of 128)
TK_PREF = 512     # contraction (multiple of 128)
TQ_PREF = 256     # attention query tile (multiple of 8)
TKV_PREF = 512    # attention key/value tile (multiple of 128)


def _pick_tile(dim, pref, align):
    """Largest multiple of `align` that divides `dim` and is <= pref,
    or `dim` itself (full extent) if dim is small / nothing divides."""
    if dim <= pref:
        return dim
    t = (pref // align) * align
    while t >= align:
        if dim % t == 0:
            return t
        t -= align
    return dim


def _itemsize(dt):
    return np.dtype(dt).itemsize


# ----------------------------- linear (tiled) ------------------------------

def _linear_kernel(x_ref, w_ref, b_ref, o_ref, acc_ref, *, activation):
    # x: [tm, tk], w (pre-transposed [in, out]): [tk, tn], b: [1, tn]
    @pl.when(pl.program_id(2) == 0)
    def _():
        acc_ref[...] = jnp.zeros_like(acc_ref)

    acc_ref[...] += jnp.dot(
        x_ref[...].astype(MXU_DTYPE), w_ref[...].astype(MXU_DTYPE),
        preferred_element_type=jnp.float32)

    @pl.when(pl.program_id(2) == pl.num_programs(2) - 1)
    def _():
        y = acc_ref[...] + b_ref[...].astype(jnp.float32)
        if activation == "relu":
            y = jnp.maximum(y, 0.0)
        o_ref[...] = y.astype(o_ref.dtype)


def linear(x, w_t, b, activation=None, out_dtype=None):
    M, K = x.shape
    _, N = w_t.shape
    out_dtype = x.dtype if out_dtype is None else out_dtype
    tm = _pick_tile(M, TM_LINEAR, 8)
    tn = _pick_tile(N, TN_PREF, 128)
    tk = _pick_tile(K, TK_PREF, 128)
    grid = (M // tm, N // tn, K // tk)
    bytes_accessed = (_itemsize(x.dtype) * M * K + _itemsize(w_t.dtype) * K * N
                      + _itemsize(out_dtype) * M * N)
    return pl.pallas_call(
        functools.partial(_linear_kernel, activation=activation),
        out_shape=jax.ShapeDtypeStruct((M, N), out_dtype),
        grid=grid,
        in_specs=[
            pl.BlockSpec((tm, tk), lambda i, j, k: (i, k)),
            pl.BlockSpec((tk, tn), lambda i, j, k: (k, j)),
            pl.BlockSpec((1, tn), lambda i, j, k: (0, j)),
        ],
        out_specs=pl.BlockSpec((tm, tn), lambda i, j, k: (i, j)),
        scratch_shapes=[pltpu.VMEM((tm, tn), jnp.float32)],
        compiler_params=pltpu.CompilerParams(
            dimension_semantics=("parallel", "parallel", "arbitrary"),
            vmem_limit_bytes=VMEM_LIMIT),
        cost_estimate=pl.CostEstimate(
            flops=2 * M * N * K, transcendentals=0,
            bytes_accessed=bytes_accessed),
    )(x, w_t, b.reshape(1, N))


# --------------- linear + residual + LayerNorm (fused epilogue) ------------

def _linear_res_ln_kernel(x_ref, w_ref, b_ref, r_ref, g_ref, bb_ref,
                          o_ref, acc_ref, *, eps):
    # y = LayerNorm(x @ w + b + residual); LN over the full (untiled) N dim.
    @pl.when(pl.program_id(1) == 0)
    def _():
        acc_ref[...] = jnp.zeros_like(acc_ref)

    acc_ref[...] += jnp.dot(
        x_ref[...].astype(MXU_DTYPE), w_ref[...].astype(MXU_DTYPE),
        preferred_element_type=jnp.float32)

    @pl.when(pl.program_id(1) == pl.num_programs(1) - 1)
    def _():
        y = acc_ref[...] + b_ref[...].astype(jnp.float32) \
            + r_ref[...].astype(jnp.float32)
        mean = jnp.mean(y, axis=-1, keepdims=True)
        var = jnp.mean(jnp.square(y - mean), axis=-1, keepdims=True)
        yhat = (y - mean) * jax.lax.rsqrt(var + eps)
        o_ref[...] = (yhat * g_ref[...].astype(jnp.float32)
                      + bb_ref[...].astype(jnp.float32)).astype(o_ref.dtype)


def linear_residual_layernorm(x, w_t, b, res, gamma, beta, eps=1e-5):
    M, K = x.shape
    _, N = w_t.shape                      # N == d_model (LayerNorm axis)
    tm = _pick_tile(M, TM_FUSED, 8)       # smaller rows: blocks scale with full N
    tk = _pick_tile(K, TK_PREF, 128)
    grid = (M // tm, K // tk)
    bytes_accessed = (_itemsize(x.dtype) * M * K + _itemsize(w_t.dtype) * K * N
                      + 4 * 3 * M * N)
    return pl.pallas_call(
        functools.partial(_linear_res_ln_kernel, eps=eps),
        out_shape=jax.ShapeDtypeStruct((M, N), res.dtype),
        grid=grid,
        in_specs=[
            pl.BlockSpec((tm, tk), lambda i, k: (i, k)),
            pl.BlockSpec((tk, N), lambda i, k: (k, 0)),
            pl.BlockSpec((1, N), lambda i, k: (0, 0)),
            pl.BlockSpec((tm, N), lambda i, k: (i, 0)),
            pl.BlockSpec((1, N), lambda i, k: (0, 0)),
            pl.BlockSpec((1, N), lambda i, k: (0, 0)),
        ],
        out_specs=pl.BlockSpec((tm, N), lambda i, k: (i, 0)),
        scratch_shapes=[pltpu.VMEM((tm, N), jnp.float32)],
        compiler_params=pltpu.CompilerParams(
            dimension_semantics=("parallel", "arbitrary"),
            vmem_limit_bytes=VMEM_LIMIT),
        cost_estimate=pl.CostEstimate(
            flops=2 * M * N * K + 10 * M * N, transcendentals=M,
            bytes_accessed=bytes_accessed),
    )(x, w_t, b.reshape(1, N), res, gamma.reshape(1, N), beta.reshape(1, N))


# ------------------------ flash-style attention -----------------------------

def _flash_attn_kernel(q_ref, k_ref, v_ref, bias_ref, o_ref,
                       m_scr, l_scr, acc_scr, *, num_heads, head_dim):
    # blocks: q -> [1, tq, D], k/v -> [1, tkv, D], bias -> [1, 1, tkv]
    # Heads are handled with an internal static loop over column slices, so
    # the DMAs, scratch and output store stay lane-dense along D.
    ki = pl.program_id(2)

    @pl.when(ki == 0)
    def _():
        m_scr[...] = jnp.full_like(m_scr, -1e30)
        l_scr[...] = jnp.zeros_like(l_scr)
        acc_scr[...] = jnp.zeros_like(acc_scr)

    q = q_ref[0].astype(MXU_DTYPE)                 # [tq, D] (Q pre-scaled via weights)
    k = k_ref[0].astype(MXU_DTYPE)                 # [tkv, D]
    v = v_ref[0].astype(MXU_DTYPE)                 # [tkv, D]
    bias = bias_ref[0].astype(jnp.float32)         # [1, tkv] key-padding bias

    for h in range(num_heads):
        sl = slice(h * head_dim, (h + 1) * head_dim)
        # QK^T by contracting the Dh dims directly (K stays lane-dense in HBM;
        # the in-tile transpose goes to the XLU, off the MXU critical slot).
        s = jax.lax.dot_general(
            q[:, sl], k[:, sl], (((1,), (1,)), ((), ())),
            preferred_element_type=jnp.float32)    # [tq, tkv]
        s = s + bias

        m_prev = m_scr[:, h:h + 1]                 # [tq, 1]
        l_prev = l_scr[:, h:h + 1]
        m_new = jnp.maximum(m_prev, jnp.max(s, axis=-1, keepdims=True))
        alpha = jnp.exp(m_prev - m_new)
        p = jnp.exp(s - m_new)                     # [tq, tkv]
        l_scr[:, h:h + 1] = alpha * l_prev + jnp.sum(p, axis=-1, keepdims=True)
        acc_scr[:, sl] = alpha * acc_scr[:, sl] + jnp.dot(
            p.astype(MXU_DTYPE), v[:, sl], preferred_element_type=jnp.float32)
        m_scr[:, h:h + 1] = m_new

    @pl.when(ki == pl.num_programs(2) - 1)
    def _():
        inv = pl.reciprocal(l_scr[...], approx=True)    # [tq, H]
        parts = [acc_scr[:, h * head_dim:(h + 1) * head_dim] * inv[:, h:h + 1]
                 for h in range(num_heads)]
        o_ref[0] = jnp.concatenate(parts, axis=-1).astype(o_ref.dtype)  # lane-dense store


def flash_attention(q, k, v, bias, num_heads):
    # q/k/v: [B, S, D] (heads packed along D), bias: [B, 1, S] (0 or -1e30)
    B, S, D = q.shape
    Dh = D // num_heads
    tq = _pick_tile(S, TQ_PREF, 8)
    tkv = _pick_tile(S, TKV_PREF, 128)
    grid = (B, S // tq, S // tkv)
    return pl.pallas_call(
        functools.partial(_flash_attn_kernel, num_heads=num_heads, head_dim=Dh),
        out_shape=jax.ShapeDtypeStruct((B, S, D), q.dtype),
        grid=grid,
        in_specs=[
            pl.BlockSpec((1, tq, D), lambda b, qi, ki: (b, qi, 0)),
            pl.BlockSpec((1, tkv, D), lambda b, qi, ki: (b, ki, 0)),
            pl.BlockSpec((1, tkv, D), lambda b, qi, ki: (b, ki, 0)),
            pl.BlockSpec((1, 1, tkv), lambda b, qi, ki: (b, 0, ki)),
        ],
        out_specs=pl.BlockSpec((1, tq, D), lambda b, qi, ki: (b, qi, 0)),
        scratch_shapes=[
            pltpu.VMEM((tq, num_heads), jnp.float32),   # running max per head
            pltpu.VMEM((tq, num_heads), jnp.float32),   # running denom per head
            pltpu.VMEM((tq, D), jnp.float32),           # output accumulator
        ],
        compiler_params=pltpu.CompilerParams(
            dimension_semantics=("parallel", "parallel", "arbitrary"),
            vmem_limit_bytes=VMEM_LIMIT),
        cost_estimate=pl.CostEstimate(
            flops=4 * B * S * S * D,
            transcendentals=B * num_heads * S * S,
            bytes_accessed=_itemsize(q.dtype) * 4 * B * S * D + 4 * B * S),
    )(q, k, v, bias)


# ------------------------------ model wrapper ------------------------------

def make_pe(max_len, d_model):
    pos = jnp.arange(max_len, dtype=jnp.float32)[:, None]
    div = jnp.exp(jnp.arange(0, d_model, 2, dtype=jnp.float32)
                  * (-math.log(10000.0) / d_model))
    pe = jnp.zeros((max_len, d_model), jnp.float32)
    pe = pe.at[:, 0::2].set(jnp.sin(pos * div))
    pe = pe.at[:, 1::2].set(jnp.cos(pos * div))
    return pe  # [max_len, d_model]


def encoder_layer(x, bias, p, num_heads):
    B, S, D = x.shape
    xf = x.reshape(B * S, D)

    # --- self-attention block (separate Q/K/V projections: no XLA head
    #     split/merge transposes, attention I/O stays [B, S, D]) ---
    q = linear(xf, p["q_wT"], p["q_b"], out_dtype=jnp.bfloat16).reshape(B, S, D)
    k = linear(xf, p["k_wT"], p["k_b"], out_dtype=jnp.bfloat16).reshape(B, S, D)
    v = linear(xf, p["v_wT"], p["v_b"], out_dtype=jnp.bfloat16).reshape(B, S, D)
    o = flash_attention(q, k, v, bias, num_heads).reshape(B * S, D)
    # out_proj + residual + LayerNorm1 fused (post-norm).
    x1 = linear_residual_layernorm(o, p["out_proj_wT"], p["out_proj_b"],
                                   xf, p["ln1_g"], p["ln1_b"])

    # --- feed-forward block ---
    h = linear(x1, p["ff1_wT"], p["ff1_b"], activation="relu",
               out_dtype=jnp.bfloat16)
    # FF2 + residual + LayerNorm2 fused.
    x2 = linear_residual_layernorm(h, p["ff2_wT"], p["ff2_b"],
                                   x1, p["ln2_g"], p["ln2_b"])
    return x2.reshape(B, S, D)


def transformer_encoder(x, params, num_heads):
    B, S, _ = x.shape
    D = params["proj_wT"].shape[1]

    # src_key_padding_mask = (|x|.sum(-1) == 0); True -> masked key.
    # Large finite negative (not -inf) so fully-masked rows stay finite.
    pad_mask = jnp.sum(jnp.abs(x), axis=-1) == 0                    # [B, S]
    bias = jnp.where(pad_mask, -1e30, 0.0).astype(jnp.float32)[:, None, :]

    h = linear(x.reshape(B * S, -1), params["proj_wT"], params["proj_b"])
    h = h.reshape(B, S, D)

    # FixedPositionalEncoding: with batch-first input, pe[:x.size(0)] indexes
    # by *batch* and broadcasts over the sequence dim (faithful to the
    # reference module's behaviour with batch_first=True).
    h = h + params["pe"][:B][:, None, :]
    # TODO(synk): dropout omitted (eval-mode / inference semantics).

    for p in params["layers"]:
        h = encoder_layer(h, bias, p, num_heads)
    return h


def init_params(key, input_dim, num_heads, hidden_dim, num_layers, max_len=1024):
    D = hidden_dim
    F = 4 * D
    Dh = D // num_heads
    q_scale = 1.0 / math.sqrt(Dh)         # folded into the Q projection
    keys = jax.random.split(key, 2 + num_layers)

    def w(k, shape, scale=0.05):
        return scale * jax.random.normal(k, shape, dtype=jnp.float32)

    def as_mxu(arr):
        # Weights live in bf16 (halves weight DMA, native MXU operand dtype).
        return arr.astype(jnp.bfloat16)

    params = {
        "proj_wT": as_mxu(w(keys[0], (input_dim, D))),   # pre-transposed [in, out]
        "proj_b": w(keys[1], (D,)),
        "pe": make_pe(max_len, D),
        "layers": [],
    }
    for l in range(num_layers):
        kk = jax.random.split(keys[2 + l], 8)
        params["layers"].append({
            # Q projection pre-scaled by 1/sqrt(Dh) (no in-kernel scale mul).
            "q_wT": as_mxu(w(kk[0], (D, D)) * q_scale),
            "q_b": jnp.zeros((D,), jnp.float32) * q_scale,
            "k_wT": as_mxu(w(kk[1], (D, D))),
            "k_b": jnp.zeros((D,), jnp.float32),
            "v_wT": as_mxu(w(kk[2], (D, D))),
            "v_b": jnp.zeros((D,), jnp.float32),
            "out_proj_wT": as_mxu(w(kk[3], (D, D))),
            "out_proj_b": jnp.zeros((D,), jnp.float32),
            "ln1_g": jnp.ones((D,), jnp.float32),
            "ln1_b": jnp.zeros((D,), jnp.float32),
            "ff1_wT": as_mxu(w(kk[4], (D, F))),
            "ff1_b": w(kk[5], (F,)),
            "ff2_wT": as_mxu(w(kk[6], (F, D))),
            "ff2_b": w(kk[7], (D,)),
            "ln2_g": jnp.ones((D,), jnp.float32),
            "ln2_b": jnp.zeros((D,), jnp.float32),
        })
    return params


if __name__ == "__main__":
    # small shapes consistent with the module's forward
    B, S, INPUT_DIM, HIDDEN, HEADS, LAYERS = 2, 8, 4, 32, 4, 2

    key = jax.random.PRNGKey(0)
    kx, kp = jax.random.split(key)
    x = jax.random.normal(kx, (B, S, INPUT_DIM), dtype=jnp.float32)

    params = init_params(kp, INPUT_DIM, HEADS, HIDDEN, LAYERS, max_len=1024)

    fwd = jax.jit(functools.partial(transformer_encoder, num_heads=HEADS))
    out = fwd(x, params)
    out = jax.block_until_ready(out)
    assert out.shape == (B, S, HIDDEN), out.shape
    assert bool(jnp.all(jnp.isfinite(out)))
    print("KERNEL_OK")
</pallas_src>

<mosaic_0001>
module attributes {stable_mosaic.version = 11 : i64} {
  func.func @_linear_kernel(%arg0: i32, %arg1: i32, %arg2: i32, %arg3: memref<16x4xf32, #tpu.memory_space<vmem>>, %arg4: memref<4x32xbf16, #tpu.memory_space<vmem>>, %arg5: memref<1x32xf32, #tpu.memory_space<vmem>>, %arg6: memref<16x32xf32, #tpu.memory_space<vmem>>, %arg7: memref<16x32xf32, #tpu.memory_space<vmem>>) attributes {dimension_semantics = [#tpu.dimension_semantics<parallel>, #tpu.dimension_semantics<parallel>, #tpu.dimension_semantics<arbitrary>], iteration_bounds = array<i64: 1, 1, 1>, scalar_prefetch = 0 : i64, scratch_operands = 1 : i64, tpu.core_type = #tpu.core_type<tc>, window_params = [{transform_indices = @transform_0, window_bounds = array<i64: 16, 4>}, {transform_indices = @transform_1, window_bounds = array<i64: 4, 32>}, {transform_indices = @transform_2, window_bounds = array<i64: 1, 32>}, {transform_indices = @transform_3, window_bounds = array<i64: 16, 32>}]} {
    %c0_i32 = arith.constant 0 : i32
    %0 = arith.cmpi eq, %arg2, %c0_i32 : i32
    %1 = arith.extui %0 : i1 to i32
    %c0_i32_0 = arith.constant 0 : i32
    %2 = arith.cmpi ne, %1, %c0_i32_0 : i32
    scf.if %2 {
      %cst_10 = arith.constant 0.000000e+00 : f32
      %13 = vector.broadcast %cst_10 : f32 to vector<16x32xf32>
      %c0_11 = arith.constant 0 : index
      %c0_12 = arith.constant 0 : index
      %14 = vector.load %arg7[%c0_11, %c0_12] : memref<16x32xf32, #tpu.memory_space<vmem>>, vector<16x32xf32>
      tpu.vector_store %arg7[%c0_11, %c0_12], %13 {strides = array<i32>} : memref<16x32xf32, #tpu.memory_space<vmem>>, vector<16x32xf32>,
    } else {
    }
    %c0 = arith.constant 0 : index
    %c0_1 = arith.constant 0 : index
    %3 = vector.load %arg7[%c0, %c0_1] : memref<16x32xf32, #tpu.memory_space<vmem>>, vector<16x32xf32>
    %c0_2 = arith.constant 0 : index
    %c0_3 = arith.constant 0 : index
    %4 = vector.load %arg3[%c0_2, %c0_3] : memref<16x4xf32, #tpu.memory_space<vmem>>, vector<16x4xf32>
    %5 = arith.truncf %4 : vector<16x4xf32> to vector<16x4xbf16>
    %c0_4 = arith.constant 0 : index
    %c0_5 = arith.constant 0 : index
    %6 = vector.load %arg4[%c0_4, %c0_5] : memref<4x32xbf16, #tpu.memory_space<vmem>>, vector<4x32xbf16>
    %cst = arith.constant dense<0.000000e+00> : vector<16x32xf32>
    %7 = tpu.matmul %5, %6, %cst {dimension_numbers = #tpu.dot_dimension_numbers<[1], [0], [0], [1], [0, 0, 1, 1], [], []>} : vector<16x4xbf16>, vector<4x32xbf16>, vector<16x32xf32> -> vector<16x32xf32>
    %8 = arith.addf %3, %7 : vector<16x32xf32>
    %c0_6 = arith.constant 0 : index
    %c0_7 = arith.constant 0 : index
    %9 = vector.load %arg7[%c0_6, %c0_7] : memref<16x32xf32, #tpu.memory_space<vmem>>, vector<16x32xf32>
    tpu.vector_store %arg7[%c0_6, %c0_7], %8 {strides = array<i32>} : memref<16x32xf32, #tpu.memory_space<vmem>>, vector<16x32xf32>,
    %c0_i32_8 = arith.constant 0 : i32
    %10 = arith.cmpi eq, %arg2, %c0_i32_8 : i32
    %11 = arith.extui %10 : i1 to i32
    %c0_i32_9 = arith.constant 0 : i32
    %12 = arith.cmpi ne, %11, %c0_i32_9 : i32
    scf.if %12 {
      %c0_10 = arith.constant 0 : index
      %c0_11 = arith.constant 0 : index
      %13 = vector.load %arg7[%c0_10, %c0_11] : memref<16x32xf32, #tpu.memory_space<vmem>>, vector<16x32xf32>
      %c0_12 = arith.constant 0 : index
      %c0_13 = arith.constant 0 : index
      %14 = vector.load %arg5[%c0_12, %c0_13] : memref<1x32xf32, #tpu.memory_space<vmem>>, vector<1x32xf32>
      %15 = vector.broadcast %14 : vector<1x32xf32> to vector<16x32xf32>
      %16 = arith.addf %13, %15 : vector<16x32xf32>
      %c0_14 = arith.constant 0 : index
      %c0_15 = arith.constant 0 : index
      %17 = vector.load %arg6[%c0_14, %c0_15] : memref<16x32xf32, #tpu.memory_space<vmem>>, vector<16x32xf32>
      tpu.vector_store %arg6[%c0_14, %c0_15], %16 {strides = array<i32>} : memref<16x32xf32, #tpu.memory_space<vmem>>, vector<16x32xf32>,
    } else {
    }
    return
  }
  func.func @transform_0(%arg0: i32, %arg1: i32, %arg2: i32) -> (i32, i32) {
    %c0_i32 = arith.constant 0 : i32
    return %arg0, %arg2 : i32, i32
  }
  func.func @transform_1(%arg0: i32, %arg1: i32, %arg2: i32) -> (i32, i32) {
    %c0_i32 = arith.constant 0 : i32
    return %arg2, %arg1 : i32, i32
  }
  func.func @transform_2(%arg0: i32, %arg1: i32, %arg2: i32) -> (i32, i32) {
    %c0_i32 = arith.constant 0 : i32
    %c0_i32_0 = arith.constant 0 : i32
    return %c0_i32, %arg1 : i32, i32
  }
  func.func @transform_3(%arg0: i32, %arg1: i32, %arg2: i32) -> (i32, i32) {
    %c0_i32 = arith.constant 0 : i32
    return %arg0, %arg1 : i32, i32
  }
}

module attributes {stable_mosaic.version = 11 : i64} {
  func.func @_flash_attn_kernel(%arg0: i32, %arg1: i32, %arg2: i32, %arg3: memref<1x8x32xbf16, #tpu.memory_space<vmem>>, %arg4: memref<1x8x32xbf16, #tpu.memory_space<vmem>>, %arg5: memref<1x8x32xbf16, #tpu.memory_space<vmem>>, %arg6: memref<1x1x8xf32, #tpu.memory_space<vmem>>, %arg7: memref<1x8x32xbf16, #tpu.memory_space<vmem>>, %arg8: memref<8x4xf32, #tpu.memory_space<vmem>>, %arg9: memref<8x4xf32, #tpu.memory_space<vmem>>, %arg10: memref<8x32xf32, #tpu.memory_space<vmem>>) attributes {dimension_semantics = [#tpu.dimension_semantics<parallel>, #tpu.dimension_semantics<parallel>, #tpu.dimension_semantics<arbitrary>], iteration_bounds = array<i64: 2, 1, 1>, scalar_prefetch = 0 : i64, scratch_operands = 3 : i64, tpu.core_type = #tpu.core_type<tc>, window_params = [{transform_indices = @transform_0, window_bounds = array<i64: 1, 8, 32>}, {transform_indices = @transform_1, window_bounds = array<i64: 1, 8, 32>}, {transform_indices = @transform_2, window_bounds = array<i64: 1, 8, 32>}, {transform_indices = @transform_3, window_bounds = array<i64: 1, 1, 8>}, {transform_indices = @transform_4, window_bounds = array<i64: 1, 8, 32>}]} {
    %c0_i32 = arith.constant 0 : i32
    %0 = arith.cmpi eq, %arg2, %c0_i32 : i32
    %1 = arith.extui %0 : i1 to i32
    %c0_i32_0 = arith.constant 0 : i32
    %2 = arith.cmpi ne, %1, %c0_i32_0 : i32
    scf.if %2 {
      %cst_71 = arith.constant -1.000000e+30 : f32
      %130 = vector.broadcast %cst_71 : f32 to vector<8x4xf32>
      %c0_72 = arith.constant 0 : index
      %c0_73 = arith.constant 0 : index
      %131 = vector.load %arg8[%c0_72, %c0_73] : memref<8x4xf32, #tpu.memory_space<vmem>>, vector<8x4xf32>
      tpu.vector_store %arg8[%c0_72, %c0_73], %130 {strides = array<i32>} : memref<8x4xf32, #tpu.memory_space<vmem>>, vector<8x4xf32>,
      %cst_74 = arith.constant 0.000000e+00 : f32
      %132 = vector.broadcast %cst_74 : f32 to vector<8x4xf32>
      %c0_75 = arith.constant 0 : index
      %c0_76 = arith.constant 0 : index
      %133 = vector.load %arg9[%c0_75, %c0_76] : memref<8x4xf32, #tpu.memory_space<vmem>>, vector<8x4xf32>
      tpu.vector_store %arg9[%c0_75, %c0_76], %132 {strides = array<i32>} : memref<8x4xf32, #tpu.memory_space<vmem>>, vector<8x4xf32>,
      %cst_77 = arith.constant 0.000000e+00 : f32
      %134 = vector.broadcast %cst_77 : f32 to vector<8x32xf32>
      %c0_78 = arith.constant 0 : index
      %c0_79 = arith.constant 0 : index
      %135 = vector.load %arg10[%c0_78, %c0_79] : memref<8x32xf32, #tpu.memory_space<vmem>>, vector<8x32xf32>
      tpu.vector_store %arg10[%c0_78, %c0_79], %134 {strides = array<i32>} : memref<8x32xf32, #tpu.memory_space<vmem>>, vector<8x32xf32>,
    } else {
    }
    %c0 = arith.constant 0 : index
    %c0_1 = arith.constant 0 : index
    %c0_2 = arith.constant 0 : index
    %3 = vector.load %arg3[%c0, %c0_1, %c0_2] : memref<1x8x32xbf16, #tpu.memory_space<vmem>>, vector<1x8x32xbf16>
    %4 = vector.shape_cast %3 : vector<1x8x32xbf16> to vector<8x32xbf16>
    %c0_3 = arith.constant 0 : index
    %c0_4 = arith.constant 0 : index
    %c0_5 = arith.constant 0 : index
    %5 = vector.load %arg4[%c0_3, %c0_4, %c0_5] : memref<1x8x32xbf16, #tpu.memory_space<vmem>>, vector<1x8x32xbf16>
    %6 = vector.shape_cast %5 : vector<1x8x32xbf16> to vector<8x32xbf16>
    %c0_6 = arith.constant 0 : index
    %c0_7 = arith.constant 0 : index
    %c0_8 = arith.constant 0 : index
    %7 = vector.load %arg5[%c0_6, %c0_7, %c0_8] : memref<1x8x32xbf16, #tpu.memory_space<vmem>>, vector<1x8x32xbf16>
    %8 = vector.shape_cast %7 : vector<1x8x32xbf16> to vector<8x32xbf16>
    %c0_9 = arith.constant 0 : index
    %c0_10 = arith.constant 0 : index
    %c0_11 = arith.constant 0 : index
    %9 = vector.load %arg6[%c0_9, %c0_10, %c0_11] : memref<1x1x8xf32, #tpu.memory_space<vmem>>, vector<1x1x8xf32>
    %10 = vector.shape_cast %9 : vector<1x1x8xf32> to vector<1x8xf32>
    %11 = vector.extract_strided_slice %4 {offsets = [0, 0], sizes = [8, 8], strides = [1, 1]} : vector<8x32xbf16> to vector<8x8xbf16>
    %12 = vector.extract_strided_slice %6 {offsets = [0, 0], sizes = [8, 8], strides = [1, 1]} : vector<8x32xbf16> to vector<8x8xbf16>
    %cst = arith.constant dense<0.000000e+00> : vector<8x8xf32>
    %13 = tpu.matmul %11, %12, %cst {dimension_numbers = #tpu.dot_dimension_numbers<[1], [1], [0], [0], [0, 0, 1, 0], [], []>} : vector<8x8xbf16>, vector<8x8xbf16>, vector<8x8xf32> -> vector<8x8xf32>
    %14 = vector.broadcast %10 : vector<1x8xf32> to vector<8x8xf32>
    %15 = arith.addf %13, %14 : vector<8x8xf32>
    %c0_12 = arith.constant 0 : index
    %c0_13 = arith.constant 0 : index
    %16 = vector.load %arg8[%c0_12, %c0_13] : memref<8x4xf32, #tpu.memory_space<vmem>>, vector<8x1xf32>
    %c0_14 = arith.constant 0 : index
    %c0_15 = arith.constant 0 : index
    %17 = vector.load %arg9[%c0_14, %c0_15] : memref<8x4xf32, #tpu.memory_space<vmem>>, vector<8x1xf32>
    %cst_16 = arith.constant dense<0xFF800000> : vector<8xf32>
    %18 = vector.multi_reduction <maximumf>, %15, %cst_16 [1] : vector<8x8xf32> to vector<8xf32>
    %19 = vector.shape_cast %18 : vector<8xf32> to vector<8x1xf32>
    %20 = arith.maximumf %16, %19 : vector<8x1xf32>
    %21 = arith.subf %16, %20 : vector<8x1xf32>
    %22 = math.exp %21 : vector<8x1xf32>
    %23 = vector.broadcast %20 : vector<8x1xf32> to vector<8x8xf32>
    %24 = arith.subf %15, %23 : vector<8x8xf32>
    %25 = math.exp %24 : vector<8x8xf32>
    %26 = arith.mulf %22, %17 : vector<8x1xf32>
    %cst_17 = arith.constant dense<0.000000e+00> : vector<8xf32>
    %27 = vector.multi_reduction <add>, %25, %cst_17 [1] : vector<8x8xf32> to vector<8xf32>
    %28 = vector.shape_cast %27 : vector<8xf32> to vector<8x1xf32>
    %29 = arith.addf %26, %28 : vector<8x1xf32>
    %c0_18 = arith.constant 0 : index
    %c0_19 = arith.constant 0 : index
    %30 = vector.load %arg9[%c0_18, %c0_19] : memref<8x4xf32, #tpu.memory_space<vmem>>, vector<8x1xf32>
    tpu.vector_store %arg9[%c0_18, %c0_19], %29 {strides = array<i32>} : memref<8x4xf32, #tpu.memory_space<vmem>>, vector<8x1xf32>,
    %c0_20 = arith.constant 0 : index
    %c0_21 = arith.constant 0 : index
    %31 = vector.load %arg10[%c0_20, %c0_21] : memref<8x32xf32, #tpu.memory_space<vmem>>, vector<8x8xf32>
    %32 = vector.broadcast %22 : vector<8x1xf32> to vector<8x8xf32>
    %33 = arith.mulf %32, %31 : vector<8x8xf32>
    %34 = arith.truncf %25 : vector<8x8xf32> to vector<8x8xbf16>
    %35 = vector.extract_strided_slice %8 {offsets = [0, 0], sizes = [8, 8], strides = [1, 1]} : vector<8x32xbf16> to vector<8x8xbf16>
    %cst_22 = arith.constant dense<0.000000e+00> : vector<8x8xf32>
    %36 = tpu.matmul %34, %35, %cst_22 {dimension_numbers = #tpu.dot_dimension_numbers<[1], [0], [0], [1], [0, 0, 1, 1], [], []>} : vector<8x8xbf16>, vector<8x8xbf16>, vector<8x8xf32> -> vector<8x8xf32>
    %37 = arith.addf %33, %36 : vector<8x8xf32>
    %c0_23 = arith.constant 0 : index
    %c0_24 = arith.constant 0 : index
    %38 = vector.load %arg10[%c0_23, %c0_24] : memref<8x32xf32, #tpu.memory_space<vmem>>, vector<8x8xf32>
    tpu.vector_store %arg10[%c0_23, %c0_24], %37 {strides = array<i32>} : memref<8x32xf32, #tpu.memory_space<vmem>>, vector<8x8xf32>,
    %c0_25 = arith.constant 0 : index
    %c0_26 = arith.constant 0 : index
    %39 = vector.load %arg8[%c0_25, %c0_26] : memref<8x4xf32, #tpu.memory_space<vmem>>, vector<8x1xf32>
    tpu.vector_store %arg8[%c0_25, %c0_26], %20 {strides = array<i32>} : memref<8x4xf32, #tpu.memory_space<vmem>>, vector<8x1xf32>,
    %40 = vector.extract_strided_slice %4 {offsets = [0, 8], sizes = [8, 8], strides = [1, 1]} : vector<8x32xbf16> to vector<8x8xbf16>
    %41 = vector.extract_strided_slice %6 {offsets = [0, 8], sizes = [8, 8], strides = [1, 1]} : vector<8x32xbf16> to vector<8x8xbf16>
    %cst_27 = arith.constant dense<0.000000e+00> : vector<8x8xf32>
    %42 = tpu.matmul %40, %41, %cst_27 {dimension_numbers = #tpu.dot_dimension_numbers<[1], [1], [0], [0], [0, 0, 1, 0], [], []>} : vector<8x8xbf16>, vector<8x8xbf16>, vector<8x8xf32> -> vector<8x8xf32>
    %43 = vector.broadcast %10 : vector<1x8xf32> to vector<8x8xf32>
    %44 = arith.addf %42, %43 : vector<8x8xf32>
    %c0_28 = arith.constant 0 : index
    %c1 = arith.constant 1 : index
    %45 = vector.load %arg8[%c0_28, %c1] : memref<8x4xf32, #tpu.memory_space<vmem>>, vector<8x1xf32>
    %c0_29 = arith.constant 0 : index
    %c1_30 = arith.constant 1 : index
    %46 = vector.load %arg9[%c0_29, %c1_30] : memref<8x4xf32, #tpu.memory_space<vmem>>, vector<8x1xf32>
    %cst_31 = arith.constant dense<0xFF800000> : vector<8xf32>
    %47 = vector.multi_reduction <maximumf>, %44, %cst_31 [1] : vector<8x8xf32> to vector<8xf32>
    %48 = vector.shape_cast %47 : vector<8xf32> to vector<8x1xf32>
    %49 = arith.maximumf %45, %48 : vector<8x1xf32>
    %50 = arith.subf %45, %49 : vector<8x1xf32>
    %51 = math.exp %50 : vector<8x1xf32>
    %52 = vector.broadcast %49 : vector<8x1xf32> to vector<8x8xf32>
    %53 = arith.subf %44, %52 : vector<8x8xf32>
    %54 = math.exp %53 : vector<8x8xf32>
    %55 = arith.mulf %51, %46 : vector<8x1xf32>
    %cst_32 = arith.constant dense<0.000000e+00> : vector<8xf32>
    %56 = vector.multi_reduction <add>, %54, %cst_32 [1] : vector<8x8xf32> to vector<8xf32>
    %57 = vector.shape_cast %56 : vector<8xf32> to vector<8x1xf32>
    %58 = arith.addf %55, %57 : vector<8x1xf32>
    %c0_33 = arith.constant 0 : index
    %c1_34 = arith.constant 1 : index
    %59 = vector.load %arg9[%c0_33, %c1_34] : memref<8x4xf32, #tpu.memory_space<vmem>>, vector<8x1xf32>
    tpu.vector_store %arg9[%c0_33, %c1_34], %58 {strides = array<i32>} : memref<8x4xf32, #tpu.memory_space<vmem>>, vector<8x1xf32>,
    %c0_35 = arith.constant 0 : index
    %c8 = arith.constant 8 : index
    %60 = vector.load %arg10[%c0_35, %c8] : memref<8x32xf32, #tpu.memory_space<vmem>>, vector<8x8xf32>
    %61 = vector.broadcast %51 : vector<8x1xf32> to vector<8x8xf32>
    %62 = arith.mulf %61, %60 : vector<8x8xf32>
    %63 = arith.truncf %54 : vector<8x8xf32> to vector<8x8xbf16>
    %64 = vector.extract_strided_slice %8 {offsets = [0, 8], sizes = [8, 8], strides = [1, 1]} : vector<8x32xbf16> to vector<8x8xbf16>
    %cst_36 = arith.constant dense<0.000000e+00> : vector<8x8xf32>
    %65 = tpu.matmul %63, %64, %cst_36 {dimension_numbers = #tpu.dot_dimension_numbers<[1], [0], [0], [1], [0, 0, 1, 1], [], []>} : vector<8x8xbf16>, vector<8x8xbf16>, vector<8x8xf32> -> vector<8x8xf32>
    %66 = arith.addf %62, %65 : vector<8x8xf32>
    %c0_37 = arith.constant 0 : index
    %c8_38 = arith.constant 8 : index
    %67 = vector.load %arg10[%c0_37, %c8_38] : memref<8x32xf32, #tpu.memory_space<vmem>>, vector<8x8xf32>
    tpu.vector_store %arg10[%c0_37, %c8_38], %66 {strides = array<i32>} : memref<8x32xf32, #tpu.memory_space<vmem>>, vector<8x8xf32>,
    %c0_39 = arith.constant 0 : index
    %c1_40 = arith.constant 1 : index
    %68 = vector.load %arg8[%c0_39, %c1_40] : memref<8x4xf32, #tpu.memory_space<vmem>>, vector<8x1xf32>
    tpu.vector_store %arg8[%c0_39, %c1_40], %49 {strides = array<i32>} : memref<8x4xf32, #tpu.memory_space<vmem>>, vector<8x1xf32>,
    %69 = vector.extract_strided_slice %4 {offsets = [0, 16], sizes = [8, 8], strides = [1, 1]} : vector<8x32xbf16> to vector<8x8xbf16>
    %70 = vector.extract_strided_slice %6 {offsets = [0, 16], sizes = [8, 8], strides = [1, 1]} : vector<8x32xbf16> to vector<8x8xbf16>
    %cst_41 = arith.constant dense<0.000000e+00> : vector<8x8xf32>
    %71 = tpu.matmul %69, %70, %cst_41 {dimension_numbers = #tpu.dot_dimension_numbers<[1], [1], [0], [0], [0, 0, 1, 0], [], []>} : vector<8x8xbf16>, vector<8x8xbf16>, vector<8x8xf32> -> vector<8x8xf32>
    %72 = vector.broadcast %10 : vector<1x8xf32> to vector<8x8xf32>
    %73 = arith.addf %71, %72 : vector<8x8xf32>
    %c0_42 = arith.constant 0 : index
    %c2 = arith.constant 2 : index
    %74 = vector.load %arg8[%c0_42, %c2] : memref<8x4xf32, #tpu.memory_space<vmem>>, vector<8x1xf32>
    %c0_43 = arith.constant 0 : index
    %c2_44 = arith.constant 2 : index
    %75 = vector.load %arg9[%c0_43, %c2_44] : memref<8x4xf32, #tpu.memory_space<vmem>>, vector<8x1xf32>
    %cst_45 = arith.constant dense<0xFF800000> : vector<8xf32>
    %76 = vector.multi_reduction <maximumf>, %73, %cst_45 [1] : vector<8x8xf32> to vector<8xf32>
    %77 = vector.shape_cast %76 : vector<8xf32> to vector<8x1xf32>
    %78 = arith.maximumf %74, %77 : vector<8x1xf32>
    %79 = arith.subf %74, %78 : vector<8x1xf32>
    %80 = math.exp %79 : vector<8x1xf32>
    %81 = vector.broadcast %78 : vector<8x1xf32> to vector<8x8xf32>
    %82 = arith.subf %73, %81 : vector<8x8xf32>
    %83 = math.exp %82 : vector<8x8xf32>
    %84 = arith.mulf %80, %75 : vector<8x1xf32>
    %cst_46 = arith.constant dense<0.000000e+00> : vector<8xf32>
    %85 = vector.multi_reduction <add>, %83, %cst_46 [1] : vector<8x8xf32> to vector<8xf32>
    %86 = vector.shape_cast %85 : vector<8xf32> to vector<8x1xf32>
    %87 = arith.addf %84, %86 : vector<8x1xf32>
    %c0_47 = arith.constant 0 : index
    %c2_48 = arith.constant 2 : index
    %88 = vector.load %arg9[%c0_47, %c2_48] : memref<8x4xf32, #tpu.memory_space<vmem>>, vector<8x1xf32>
    tpu.vector_store %arg9[%c0_47, %c2_48], %87 {strides = array<i32>} : memref<8x4xf32, #tpu.memory_space<vmem>>, vector<8x1xf32>,
    %c0_49 = arith.constant 0 : index
    %c16 = arith.constant 16 : index
    %89 = vector.load %arg10[%c0_49, %c16] : memref<8x32xf32, #tpu.memory_space<vmem>>, vector<8x8xf32>
    %90 = vector.broadcast %80 : vector<8x1xf32> to vector<8x8xf32>
    %91 = arith.mulf %90, %89 : vector<8x8xf32>
    %92 = arith.truncf %83 : vector<8x8xf32> to vector<8x8xbf16>
    %93 = vector.extract_strided_slice %8 {offsets = [0, 16], sizes = [8, 8], strides = [1, 1]} : vector<8x32xbf16> to vector<8x8xbf16>
    %cst_50 = arith.constant dense<0.000000e+00> : vector<8x8xf32>
    %94 = tpu.matmul %92, %93, %cst_50 {dimension_numbers = #tpu.dot_dimension_numbers<[1], [0], [0], [1], [0, 0, 1, 1], [], []>} : vector<8x8xbf16>, vector<8x8xbf16>, vector<8x8xf32> -> vector<8x8xf32>
    %95 = arith.addf %91, %94 : vector<8x8xf32>
    %c0_51 = arith.constant 0 : index
    %c16_52 = arith.constant 16 : index
    %96 = vector.load %arg10[%c0_51, %c16_52] : memref<8x32xf32, #tpu.memory_space<vmem>>, vector<8x8xf32>
    tpu.vector_store %arg10[%c0_51, %c16_52], %95 {strides = array<i32>} : memref<8x32xf32, #tpu.memory_space<vmem>>, vector<8x8xf32>,
    %c0_53 = arith.constant 0 : index
    %c2_54 = arith.constant 2 : index
    %97 = vector.load %arg8[%c0_53, %c2_54] : memref<8x4xf32, #tpu.memory_space<vmem>>, vector<8x1xf32>
    tpu.vector_store %arg8[%c0_53, %c2_54], %78 {strides = array<i32>} : memref<8x4xf32, #tpu.memory_space<vmem>>, vector<8x1xf32>,
    %98 = vector.extract_strided_slice %4 {offsets = [0, 24], sizes = [8, 8], strides = [1, 1]} : vector<8x32xbf16> to vector<8x8xbf16>
    %99 = vector.extract_strided_slice %6 {offsets = [0, 24], sizes = [8, 8], strides = [1, 1]} : vector<8x32xbf16> to vector<8x8xbf16>
    %cst_55 = arith.constant dense<0.000000e+00> : vector<8x8xf32>
    %100 = tpu.matmul %98, %99, %cst_55 {dimension_numbers = #tpu.dot_dimension_numbers<[1], [1], [0], [0], [0, 0, 1, 0], [], []>} : vector<8x8xbf16>, vector<8x8xbf16>, vector<8x8xf32> -> vector<8x8xf32>
    %101 = vector.broadcast %10 : vector<1x8xf32> to vector<8x8xf32>
    %102 = arith.addf %100, %101 : vector<8x8xf32>
    %c0_56 = arith.constant 0 : index
    %c3 = arith.constant 3 : index
    %103 = vector.load %arg8[%c0_56, %c3] : memref<8x4xf32, #tpu.memory_space<vmem>>, vector<8x1xf32>
    %c0_57 = arith.constant 0 : index
    %c3_58 = arith.constant 3 : index
    %104 = vector.load %arg9[%c0_57, %c3_58] : memref<8x4xf32, #tpu.memory_space<vmem>>, vector<8x1xf32>
    %cst_59 = arith.constant dense<0xFF800000> : vector<8xf32>
    %105 = vector.multi_reduction <maximumf>, %102, %cst_59 [1] : vector<8x8xf32> to vector<8xf32>
    %106 = vector.shape_cast %105 : vector<8xf32> to vector<8x1xf32>
    %107 = arith.maximumf %103, %106 : vector<8x1xf32>
    %108 = arith.subf %103, %107 : vector<8x1xf32>
    %109 = math.exp %108 : vector<8x1xf32>
    %110 = vector.broadcast %107 : vector<8x1xf32> to vector<8x8xf32>
    %111 = arith.subf %102, %110 : vector<8x8xf32>
    %112 = math.exp %111 : vector<8x8xf32>
    %113 = arith.mulf %109, %104 : vector<8x1xf32>
    %cst_60 = arith.constant dense<0.000000e+00> : vector<8xf32>
    %114 = vector.multi_reduction <add>, %112, %cst_60 [1] : vector<8x8xf32> to vector<8xf32>
    %115 = vector.shape_cast %114 : vector<8xf32> to vector<8x1xf32>
    %116 = arith.addf %113, %115 : vector<8x1xf32>
    %c0_61 = arith.constant 0 : index
    %c3_62 = arith.constant 3 : index
    %117 = vector.load %arg9[%c0_61, %c3_62] : memref<8x4xf32, #tpu.memory_space<vmem>>, vector<8x1xf32>
    tpu.vector_store %arg9[%c0_61, %c3_62], %116 {strides = array<i32>} : memref<8x4xf32, #tpu.memory_space<vmem>>, vector<8x1xf32>,
    %c0_63 = arith.constant 0 : index
    %c24 = arith.constant 24 : index
    %118 = vector.load %arg10[%c0_63, %c24] : memref<8x32xf32, #tpu.memory_space<vmem>>, vector<8x8xf32>
    %119 = vector.broadcast %109 : vector<8x1xf32> to vector<8x8xf32>
    %120 = arith.mulf %119, %118 : vector<8x8xf32>
    %121 = arith.truncf %112 : vector<8x8xf32> to vector<8x8xbf16>
    %122 = vector.extract_strided_slice %8 {offsets = [0, 24], sizes = [8, 8], strides = [1, 1]} : vector<8x32xbf16> to vector<8x8xbf16>
    %cst_64 = arith.constant dense<0.000000e+00> : vector<8x8xf32>
    %123 = tpu.matmul %121, %122, %cst_64 {dimension_numbers = #tpu.dot_dimension_numbers<[1], [0], [0], [1], [0, 0, 1, 1], [], []>} : vector<8x8xbf16>, vector<8x8xbf16>, vector<8x8xf32> -> vector<8x8xf32>
    %124 = arith.addf %120, %123 : vector<8x8xf32>
    %c0_65 = arith.constant 0 : index
    %c24_66 = arith.constant 24 : index
    %125 = vector.load %arg10[%c0_65, %c24_66] : memref<8x32xf32, #tpu.memory_space<vmem>>, vector<8x8xf32>
    tpu.vector_store %arg10[%c0_65, %c24_66], %124 {strides = array<i32>} : memref<8x32xf32, #tpu.memory_space<vmem>>, vector<8x8xf32>,
    %c0_67 = arith.constant 0 : index
    %c3_68 = arith.constant 3 : index
    %126 = vector.load %arg8[%c0_67, %c3_68] : memref<8x4xf32, #tpu.memory_space<vmem>>, vector<8x1xf32>
    tpu.vector_store %arg8[%c0_67, %c3_68], %107 {strides = array<i32>} : memref<8x4xf32, #tpu.memory_space<vmem>>, vector<8x1xf32>,
    %c0_i32_69 = arith.constant 0 : i32
    %127 = arith.cmpi eq, %arg2, %c0_i32_69 : i32
    %128 = arith.extui %127 : i1 to i32
    %c0_i32_70 = arith.constant 0 : i32
    %129 = arith.cmpi ne, %128, %c0_i32_70 : i32
    scf.if %129 {
      %c0_71 = arith.constant 0 : index
      %c0_72 = arith.constant 0 : index
      %130 = vector.load %arg9[%c0_71, %c0_72] : memref<8x4xf32, #tpu.memory_space<vmem>>, vector<8x4xf32>
      %131 = tpu.reciprocal %130 {approx = true} : vector<8x4xf32> -> vector<8x4xf32>
      %c0_73 = arith.constant 0 : index
      %c0_74 = arith.constant 0 : index
      %132 = vector.load %arg10[%c0_73, %c0_74] : memref<8x32xf32, #tpu.memory_space<vmem>>, vector<8x8xf32>
      %133 = vector.extract_strided_slice %131 {offsets = [0, 0], sizes = [8, 1], strides = [1, 1]} : vector<8x4xf32> to vector<8x1xf32>
      %134 = vector.broadcast %133 : vector<8x1xf32> to vector<8x8xf32>
      %135 = arith.mulf %132, %134 : vector<8x8xf32>
      %c0_75 = arith.constant 0 : index
      %c8_76 = arith.constant 8 : index
      %136 = vector.load %arg10[%c0_75, %c8_76] : memref<8x32xf32, #tpu.memory_space<vmem>>, vector<8x8xf32>
      %137 = vector.extract_strided_slice %131 {offsets = [0, 1], sizes = [8, 1], strides = [1, 1]} : vector<8x4xf32> to vector<8x1xf32>
      %138 = vector.broadcast %137 : vector<8x1xf32> to vector<8x8xf32>
      %139 = arith.mulf %136, %138 : vector<8x8xf32>
      %c0_77 = arith.constant 0 : index
      %c16_78 = arith.constant 16 : index
      %140 = vector.load %arg10[%c0_77, %c16_78] : memref<8x32xf32, #tpu.memory_space<vmem>>, vector<8x8xf32>
      %141 = vector.extract_strided_slice %131 {offsets = [0, 2], sizes = [8, 1], strides = [1, 1]} : vector<8x4xf32> to vector<8x1xf32>
      %142 = vector.broadcast %141 : vector<8x1xf32> to vector<8x8xf32>
      %143 = arith.mulf %140, %142 : vector<8x8xf32>
      %c0_79 = arith.constant 0 : index
      %c24_80 = arith.constant 24 : index
      %144 = vector.load %arg10[%c0_79, %c24_80] : memref<8x32xf32, #tpu.memory_space<vmem>>, vector<8x8xf32>
      %145 = vector.extract_strided_slice %131 {offsets = [0, 3], sizes = [8, 1], strides = [1, 1]} : vector<8x4xf32> to vector<8x1xf32>
      %146 = vector.broadcast %145 : vector<8x1xf32> to vector<8x8xf32>
      %147 = arith.mulf %144, %146 : vector<8x8xf32>
      %148 = tpu.concatenate %135, %139, %143, %147 in 1 : vector<8x8xf32>, vector<8x8xf32>, vector<8x8xf32>, vector<8x8xf32> -> vector<8x32xf32>
      %149 = arith.truncf %148 : vector<8x32xf32> to vector<8x32xbf16>
      %c0_81 = arith.constant 0 : index
      %c0_82 = arith.constant 0 : index
      %c0_83 = arith.constant 0 : index
      %150 = vector.load %arg7[%c0_81, %c0_82, %c0_83] : memref<1x8x32xbf16, #tpu.memory_space<vmem>>, vector<1x8x32xbf16>
      %151 = vector.shape_cast %150 : vector<1x8x32xbf16> to vector<8x32xbf16>
      %152 = vector.shape_cast %149 : vector<8x32xbf16> to vector<1x8x32xbf16>
      tpu.vector_store %arg7[%c0_81, %c0_82, %c0_83], %152 {strides = array<i32>} : memref<1x8x32xbf16, #tpu.memory_space<vmem>>, vector<1x8x32xbf16>,
    } else {
    }
    return
  }
  func.func @transform_0(%arg0: i32, %arg1: i32, %arg2: i32) -> (i32, i32, i32) {
    %c0_i32 = arith.constant 0 : i32
    %c0_i32_0 = arith.constant 0 : i32
    return %arg0, %arg1, %c0_i32 : i32, i32, i32
  }
  func.func @transform_1(%arg0: i32, %arg1: i32, %arg2: i32) -> (i32, i32, i32) {
    %c0_i32 = arith.constant 0 : i32
    %c0_i32_0 = arith.constant 0 : i32
    return %arg0, %arg2, %c0_i32 : i32, i32, i32
  }
  func.func @transform_2(%arg0: i32, %arg1: i32, %arg2: i32) -> (i32, i32, i32) {
    %c0_i32 = arith.constant 0 : i32
    %c0_i32_0 = arith.constant 0 : i32
    return %arg0, %arg2, %c0_i32 : i32, i32, i32
  }
  func.func @transform_3(%arg0: i32, %arg1: i32, %arg2: i32) -> (i32, i32, i32) {
    %c0_i32 = arith.constant 0 : i32
    %c0_i32_0 = arith.constant 0 : i32
    return %arg0, %c0_i32, %arg2 : i32, i32, i32
  }
  func.func @transform_4(%arg0: i32, %arg1: i32, %arg2: i32) -> (i32, i32, i32) {
    %c0_i32 = arith.constant 0 : i32
    %c0_i32_0 = arith.constant 0 : i32
    return %arg0, %arg1, %c0_i32 : i32, i32, i32
  }
}

module attributes {stable_mosaic.version = 11 : i64} {
  func.func @_linear_kernel(%arg0: i32, %arg1: i32, %arg2: i32, %arg3: memref<16x32xf32, #tpu.memory_space<vmem>>, %arg4: memref<32x32xbf16, #tpu.memory_space<vmem>>, %arg5: memref<1x32xf32, #tpu.memory_space<vmem>>, %arg6: memref<16x32xbf16, #tpu.memory_space<vmem>>, %arg7: memref<16x32xf32, #tpu.memory_space<vmem>>) attributes {dimension_semantics = [#tpu.dimension_semantics<parallel>, #tpu.dimension_semantics<parallel>, #tpu.dimension_semantics<arbitrary>], iteration_bounds = array<i64: 1, 1, 1>, scalar_prefetch = 0 : i64, scratch_operands = 1 : i64, tpu.core_type = #tpu.core_type<tc>, window_params = [{transform_indices = @transform_0, window_bounds = array<i64: 16, 32>}, {transform_indices = @transform_1, window_bounds = array<i64: 32, 32>}, {transform_indices = @transform_2, window_bounds = array<i64: 1, 32>}, {transform_indices = @transform_3, window_bounds = array<i64: 16, 32>}]} {
    %c0_i32 = arith.constant 0 : i32
    %0 = arith.cmpi eq, %arg2, %c0_i32 : i32
    %1 = arith.extui %0 : i1 to i32
    %c0_i32_0 = arith.constant 0 : i32
    %2 = arith.cmpi ne, %1, %c0_i32_0 : i32
    scf.if %2 {
      %cst_10 = arith.constant 0.000000e+00 : f32
      %13 = vector.broadcast %cst_10 : f32 to vector<16x32xf32>
      %c0_11 = arith.constant 0 : index
      %c0_12 = arith.constant 0 : index
      %14 = vector.load %arg7[%c0_11, %c0_12] : memref<16x32xf32, #tpu.memory_space<vmem>>, vector<16x32xf32>
      tpu.vector_store %arg7[%c0_11, %c0_12], %13 {strides = array<i32>} : memref<16x32xf32, #tpu.memory_space<vmem>>, vector<16x32xf32>,
    } else {
    }
    %c0 = arith.constant 0 : index
    %c0_1 = arith.constant 0 : index
    %3 = vector.load %arg7[%c0, %c0_1] : memref<16x32xf32, #tpu.memory_space<vmem>>, vector<16x32xf32>
    %c0_2 = arith.constant 0 : index
    %c0_3 = arith.constant 0 : index
    %4 = vector.load %arg3[%c0_2, %c0_3] : memref<16x32xf32, #tpu.memory_space<vmem>>, vector<16x32xf32>
    %5 = arith.truncf %4 : vector<16x32xf32> to vector<16x32xbf16>
    %c0_4 = arith.constant 0 : index
    %c0_5 = arith.constant 0 : index
    %6 = vector.load %arg4[%c0_4, %c0_5] : memref<32x32xbf16, #tpu.memory_space<vmem>>, vector<32x32xbf16>
    %cst = arith.constant dense<0.000000e+00> : vector<16x32xf32>
    %7 = tpu.matmul %5, %6, %cst {dimension_numbers = #tpu.dot_dimension_numbers<[1], [0], [0], [1], [0, 0, 1, 1], [], []>} : vector<16x32xbf16>, vector<32x32xbf16>, vector<16x32xf32> -> vector<16x32xf32>
    %8 = arith.addf %3, %7 : vector<16x32xf32>
    %c0_6 = arith.constant 0 : index
    %c0_7 = arith.constant 0 : index
    %9 = vector.load %arg7[%c0_6, %c0_7] : memref<16x32xf32, #tpu.memory_space<vmem>>, vector<16x32xf32>
    tpu.vector_store %arg7[%c0_6, %c0_7], %8 {strides = array<i32>} : memref<16x32xf32, #tpu.memory_space<vmem>>, vector<16x32xf32>,
    %c0_i32_8 = arith.constant 0 : i32
    %10 = arith.cmpi eq, %arg2, %c0_i32_8 : i32
    %11 = arith.extui %10 : i1 to i32
    %c0_i32_9 = arith.constant 0 : i32
    %12 = arith.cmpi ne, %11, %c0_i32_9 : i32
    scf.if %12 {
      %c0_10 = arith.constant 0 : index
      %c0_11 = arith.constant 0 : index
      %13 = vector.load %arg7[%c0_10, %c0_11] : memref<16x32xf32, #tpu.memory_space<vmem>>, vector<16x32xf32>
      %c0_12 = arith.constant 0 : index
      %c0_13 = arith.constant 0 : index
      %14 = vector.load %arg5[%c0_12, %c0_13] : memref<1x32xf32, #tpu.memory_space<vmem>>, vector<1x32xf32>
      %15 = vector.broadcast %14 : vector<1x32xf32> to vector<16x32xf32>
      %16 = arith.addf %13, %15 : vector<16x32xf32>
      %17 = arith.truncf %16 : vector<16x32xf32> to vector<16x32xbf16>
      %c0_14 = arith.constant 0 : index
      %c0_15 = arith.constant 0 : index
      %18 = vector.load %arg6[%c0_14, %c0_15] : memref<16x32xbf16, #tpu.memory_space<vmem>>, vector<16x32xbf16>
      tpu.vector_store %arg6[%c0_14, %c0_15], %17 {strides = array<i32>} : memref<16x32xbf16, #tpu.memory_space<vmem>>, vector<16x32xbf16>,
    } else {
    }
    return
  }
  func.func @transform_0(%arg0: i32, %arg1: i32, %arg2: i32) -> (i32, i32) {
    %c0_i32 = arith.constant 0 : i32
    return %arg0, %arg2 : i32, i32
  }
  func.func @transform_1(%arg0: i32, %arg1: i32, %arg2: i32) -> (i32, i32) {
    %c0_i32 = arith.constant 0 : i32
    return %arg2, %arg1 : i32, i32
  }
  func.func @transform_2(%arg0: i32, %arg1: i32, %arg2: i32) -> (i32, i32) {
    %c0_i32 = arith.constant 0 : i32
    %c0_i32_0 = arith.constant 0 : i32
    return %c0_i32, %arg1 : i32, i32
  }
  func.func @transform_3(%arg0: i32, %arg1: i32, %arg2: i32) -> (i32, i32) {
    %c0_i32 = arith.constant 0 : i32
    return %arg0, %arg1 : i32, i32
  }
}

module attributes {stable_mosaic.version = 11 : i64} {
  func.func @_linear_res_ln_kernel(%arg0: i32, %arg1: i32, %arg2: memref<16x32xbf16, #tpu.memory_space<vmem>>, %arg3: memref<32x32xbf16, #tpu.memory_space<vmem>>, %arg4: memref<1x32xf32, #tpu.memory_space<vmem>>, %arg5: memref<16x32xf32, #tpu.memory_space<vmem>>, %arg6: memref<1x32xf32, #tpu.memory_space<vmem>>, %arg7: memref<1x32xf32, #tpu.memory_space<vmem>>, %arg8: memref<16x32xf32, #tpu.memory_space<vmem>>, %arg9: memref<16x32xf32, #tpu.memory_space<vmem>>) attributes {dimension_semantics = [#tpu.dimension_semantics<parallel>, #tpu.dimension_semantics<arbitrary>], iteration_bounds = array<i64: 1, 1>, scalar_prefetch = 0 : i64, scratch_operands = 1 : i64, tpu.core_type = #tpu.core_type<tc>, window_params = [{transform_indices = @transform_0, window_bounds = array<i64: 16, 32>}, {transform_indices = @transform_1, window_bounds = array<i64: 32, 32>}, {pipeline_mode = #tpu.pipeline_mode<synchronous>, transform_indices = @transform_2, window_bounds = array<i64: 1, 32>}, {transform_indices = @transform_3, window_bounds = array<i64: 16, 32>}, {pipeline_mode = #tpu.pipeline_mode<synchronous>, transform_indices = @transform_4, window_bounds = array<i64: 1, 32>}, {pipeline_mode = #tpu.pipeline_mode<synchronous>, transform_indices = @transform_5, window_bounds = array<i64: 1, 32>}, {transform_indices = @transform_6, window_bounds = array<i64: 16, 32>}]} {
    %c0_i32 = arith.constant 0 : i32
    %0 = arith.cmpi eq, %arg1, %c0_i32 : i32
    %1 = arith.extui %0 : i1 to i32
    %c0_i32_0 = arith.constant 0 : i32
    %2 = arith.cmpi ne, %1, %c0_i32_0 : i32
    scf.if %2 {
      %cst_10 = arith.constant 0.000000e+00 : f32
      %12 = vector.broadcast %cst_10 : f32 to vector<16x32xf32>
      %c0_11 = arith.constant 0 : index
      %c0_12 = arith.constant 0 : index
      %13 = vector.load %arg9[%c0_11, %c0_12] : memref<16x32xf32, #tpu.memory_space<vmem>>, vector<16x32xf32>
      tpu.vector_store %arg9[%c0_11, %c0_12], %12 {strides = array<i32>} : memref<16x32xf32, #tpu.memory_space<vmem>>, vector<16x32xf32>,
    } else {
    }
    %c0 = arith.constant 0 : index
    %c0_1 = arith.constant 0 : index
    %3 = vector.load %arg9[%c0, %c0_1] : memref<16x32xf32, #tpu.memory_space<vmem>>, vector<16x32xf32>
    %c0_2 = arith.constant 0 : index
    %c0_3 = arith.constant 0 : index
    %4 = vector.load %arg2[%c0_2, %c0_3] : memref<16x32xbf16, #tpu.memory_space<vmem>>, vector<16x32xbf16>
    %c0_4 = arith.constant 0 : index
    %c0_5 = arith.constant 0 : index
    %5 = vector.load %arg3[%c0_4, %c0_5] : memref<32x32xbf16, #tpu.memory_space<vmem>>, vector<32x32xbf16>
    %cst = arith.constant dense<0.000000e+00> : vector<16x32xf32>
    %6 = tpu.matmul %4, %5, %cst {dimension_numbers = #tpu.dot_dimension_numbers<[1], [0], [0], [1], [0, 0, 1, 1], [], []>} : vector<16x32xbf16>, vector<32x32xbf16>, vector<16x32xf32> -> vector<16x32xf32>
    %7 = arith.addf %3, %6 : vector<16x32xf32>
    %c0_6 = arith.constant 0 : index
    %c0_7 = arith.constant 0 : index
    %8 = vector.load %arg9[%c0_6, %c0_7] : memref<16x32xf32, #tpu.memory_space<vmem>>, vector<16x32xf32>
    tpu.vector_store %arg9[%c0_6, %c0_7], %7 {strides = array<i32>} : memref<16x32xf32, #tpu.memory_space<vmem>>, vector<16x32xf32>,
    %c0_i32_8 = arith.constant 0 : i32
    %9 = arith.cmpi eq, %arg1, %c0_i32_8 : i32
    %10 = arith.extui %9 : i1 to i32
    %c0_i32_9 = arith.constant 0 : i32
    %11 = arith.cmpi ne, %10, %c0_i32_9 : i32
    scf.if %11 {
      %c0_10 = arith.constant 0 : index
      %c0_11 = arith.constant 0 : index
      %12 = vector.load %arg9[%c0_10, %c0_11] : memref<16x32xf32, #tpu.memory_space<vmem>>, vector<16x32xf32>
      %c0_12 = arith.constant 0 : index
      %c0_13 = arith.constant 0 : index
      %13 = vector.load %arg4[%c0_12, %c0_13] : memref<1x32xf32, #tpu.memory_space<vmem>>, vector<1x32xf32>
      %14 = vector.broadcast %13 : vector<1x32xf32> to vector<16x32xf32>
      %15 = arith.addf %12, %14 : vector<16x32xf32>
      %c0_14 = arith.constant 0 : index
      %c0_15 = arith.constant 0 : index
      %16 = vector.load %arg5[%c0_14, %c0_15] : memref<16x32xf32, #tpu.memory_space<vmem>>, vector<16x32xf32>
      %17 = arith.addf %15, %16 : vector<16x32xf32>
      %cst_16 = arith.constant dense<0.000000e+00> : vector<16xf32>
      %18 = vector.multi_reduction <add>, %17, %cst_16 [1] : vector<16x32xf32> to vector<16xf32>
      %19 = vector.shape_cast %18 : vector<16xf32> to vector<16x1xf32>
      %cst_17 = arith.constant 3.200000e+01 : f32
      %20 = vector.broadcast %cst_17 : f32 to vector<16x1xf32>
      %21 = arith.divf %19, %20 : vector<16x1xf32>
      %22 = vector.broadcast %21 : vector<16x1xf32> to vector<16x32xf32>
      %23 = arith.subf %17, %22 : vector<16x32xf32>
      %24 = arith.mulf %23, %23 : vector<16x32xf32>
      %cst_18 = arith.constant dense<0.000000e+00> : vector<16xf32>
      %25 = vector.multi_reduction <add>, %24, %cst_18 [1] : vector<16x32xf32> to vector<16xf32>
      %26 = vector.shape_cast %25 : vector<16xf32> to vector<16x1xf32>
      %cst_19 = arith.constant 3.200000e+01 : f32
      %27 = vector.broadcast %cst_19 : f32 to vector<16x1xf32>
      %28 = arith.divf %26, %27 : vector<16x1xf32>
      %29 = vector.broadcast %21 : vector<16x1xf32> to vector<16x32xf32>
      %30 = arith.subf %17, %29 : vector<16x32xf32>
      %cst_20 = arith.constant 9.99999974E-6 : f32
      %31 = vector.broadcast %cst_20 : f32 to vector<16x1xf32>
      %32 = arith.addf %28, %31 : vector<16x1xf32>
      %33 = math.rsqrt %32 : vector<16x1xf32>
      %34 = vector.broadcast %33 : vector<16x1xf32> to vector<16x32xf32>
      %35 = arith.mulf %30, %34 : vector<16x32xf32>
      %c0_21 = arith.constant 0 : index
      %c0_22 = arith.constant 0 : index
      %36 = vector.load %arg6[%c0_21, %c0_22] : memref<1x32xf32, #tpu.memory_space<vmem>>, vector<1x32xf32>
      %37 = vector.broadcast %36 : vector<1x32xf32> to vector<16x32xf32>
      %38 = arith.mulf %35, %37 : vector<16x32xf32>
      %c0_23 = arith.constant 0 : index
      %c0_24 = arith.constant 0 : index
      %39 = vector.load %arg7[%c0_23, %c0_24] : memref<1x32xf32, #tpu.memory_space<vmem>>, vector<1x32xf32>
      %40 = vector.broadcast %39 : vector<1x32xf32> to vector<16x32xf32>
      %41 = arith.addf %38, %40 : vector<16x32xf32>
      %c0_25 = arith.constant 0 : index
      %c0_26 = arith.constant 0 : index
      %42 = vector.load %arg8[%c0_25, %c0_26] : memref<16x32xf32, #tpu.memory_space<vmem>>, vector<16x32xf32>
      tpu.vector_store %arg8[%c0_25, %c0_26], %41 {strides = array<i32>} : memref<16x32xf32, #tpu.memory_space<vmem>>, vector<16x32xf32>,
    } else {
    }
    return
  }
  func.func @transform_0(%arg0: i32, %arg1: i32) -> (i32, i32) {
    %c0_i32 = arith.constant 0 : i32
    return %arg0, %arg1 : i32, i32
  }
  func.func @transform_1(%arg0: i32, %arg1: i32) -> (i32, i32) {
    %c0_i32 = arith.constant 0 : i32
    %c0_i32_0 = arith.constant 0 : i32
    return %arg1, %c0_i32 : i32, i32
  }
  func.func @transform_2(%arg0: i32, %arg1: i32) -> (i32, i32) {
    %c0_i32 = arith.constant 0 : i32
    %c0_i32_0 = arith.constant 0 : i32
    %c0_i32_1 = arith.constant 0 : i32
    return %c0_i32, %c0_i32_0 : i32, i32
  }
  func.func @transform_3(%arg0: i32, %arg1: i32) -> (i32, i32) {
    %c0_i32 = arith.constant 0 : i32
    %c0_i32_0 = arith.constant 0 : i32
    return %arg0, %c0_i32 : i32, i32
  }
  func.func @transform_4(%arg0: i32, %arg1: i32) -> (i32, i32) {
    %c0_i32 = arith.constant 0 : i32
    %c0_i32_0 = arith.constant 0 : i32
    %c0_i32_1 = arith.constant 0 : i32
    return %c0_i32, %c0_i32_0 : i32, i32
  }
  func.func @transform_5(%arg0: i32, %arg1: i32) -> (i32, i32) {
    %c0_i32 = arith.constant 0 : i32
    %c0_i32_0 = arith.constant 0 : i32
    %c0_i32_1 = arith.constant 0 : i32
    return %c0_i32, %c0_i32_0 : i32, i32
  }
  func.func @transform_6(%arg0: i32, %arg1: i32) -> (i32, i32) {
    %c0_i32 = arith.constant 0 : i32
    %c0_i32_0 = arith.constant 0 : i32
    return %arg0, %c0_i32 : i32, i32
  }
}

module attributes {stable_mosaic.version = 11 : i64} {
  func.func @_linear_kernel(%arg0: i32, %arg1: i32, %arg2: i32, %arg3: memref<16x32xf32, #tpu.memory_space<vmem>>, %arg4: memref<32x128xbf16, #tpu.memory_space<vmem>>, %arg5: memref<1x128xf32, #tpu.memory_space<vmem>>, %arg6: memref<16x128xbf16, #tpu.memory_space<vmem>>, %arg7: memref<16x128xf32, #tpu.memory_space<vmem>>) attributes {dimension_semantics = [#tpu.dimension_semantics<parallel>, #tpu.dimension_semantics<parallel>, #tpu.dimension_semantics<arbitrary>], iteration_bounds = array<i64: 1, 1, 1>, scalar_prefetch = 0 : i64, scratch_operands = 1 : i64, tpu.core_type = #tpu.core_type<tc>, window_params = [{transform_indices = @transform_0, window_bounds = array<i64: 16, 32>}, {transform_indices = @transform_1, window_bounds = array<i64: 32, 128>}, {transform_indices = @transform_2, window_bounds = array<i64: 1, 128>}, {transform_indices = @transform_3, window_bounds = array<i64: 16, 128>}]} {
    %c0_i32 = arith.constant 0 : i32
    %0 = arith.cmpi eq, %arg2, %c0_i32 : i32
    %1 = arith.extui %0 : i1 to i32
    %c0_i32_0 = arith.constant 0 : i32
    %2 = arith.cmpi ne, %1, %c0_i32_0 : i32
    scf.if %2 {
      %cst_10 = arith.constant 0.000000e+00 : f32
      %13 = vector.broadcast %cst_10 : f32 to vector<16x128xf32>
      %c0_11 = arith.constant 0 : index
      %c0_12 = arith.constant 0 : index
      %14 = vector.load %arg7[%c0_11, %c0_12] : memref<16x128xf32, #tpu.memory_space<vmem>>, vector<16x128xf32>
      tpu.vector_store %arg7[%c0_11, %c0_12], %13 {strides = array<i32>} : memref<16x128xf32, #tpu.memory_space<vmem>>, vector<16x128xf32>,
    } else {
    }
    %c0 = arith.constant 0 : index
    %c0_1 = arith.constant 0 : index
    %3 = vector.load %arg7[%c0, %c0_1] : memref<16x128xf32, #tpu.memory_space<vmem>>, vector<16x128xf32>
    %c0_2 = arith.constant 0 : index
    %c0_3 = arith.constant 0 : index
    %4 = vector.load %arg3[%c0_2, %c0_3] : memref<16x32xf32, #tpu.memory_space<vmem>>, vector<16x32xf32>
    %5 = arith.truncf %4 : vector<16x32xf32> to vector<16x32xbf16>
    %c0_4 = arith.constant 0 : index
    %c0_5 = arith.constant 0 : index
    %6 = vector.load %arg4[%c0_4, %c0_5] : memref<32x128xbf16, #tpu.memory_space<vmem>>, vector<32x128xbf16>
    %cst = arith.constant dense<0.000000e+00> : vector<16x128xf32>
    %7 = tpu.matmul %5, %6, %cst {dimension_numbers = #tpu.dot_dimension_numbers<[1], [0], [0], [1], [0, 0, 1, 1], [], []>} : vector<16x32xbf16>, vector<32x128xbf16>, vector<16x128xf32> -> vector<16x128xf32>
    %8 = arith.addf %3, %7 : vector<16x128xf32>
    %c0_6 = arith.constant 0 : index
    %c0_7 = arith.constant 0 : index
    %9 = vector.load %arg7[%c0_6, %c0_7] : memref<16x128xf32, #tpu.memory_space<vmem>>, vector<16x128xf32>
    tpu.vector_store %arg7[%c0_6, %c0_7], %8 {strides = array<i32>} : memref<16x128xf32, #tpu.memory_space<vmem>>, vector<16x128xf32>,
    %c0_i32_8 = arith.constant 0 : i32
    %10 = arith.cmpi eq, %arg2, %c0_i32_8 : i32
    %11 = arith.extui %10 : i1 to i32
    %c0_i32_9 = arith.constant 0 : i32
    %12 = arith.cmpi ne, %11, %c0_i32_9 : i32
    scf.if %12 {
      %c0_10 = arith.constant 0 : index
      %c0_11 = arith.constant 0 : index
      %13 = vector.load %arg7[%c0_10, %c0_11] : memref<16x128xf32, #tpu.memory_space<vmem>>, vector<16x128xf32>
      %c0_12 = arith.constant 0 : index
      %c0_13 = arith.constant 0 : index
      %14 = vector.load %arg5[%c0_12, %c0_13] : memref<1x128xf32, #tpu.memory_space<vmem>>, vector<1x128xf32>
      %15 = vector.broadcast %14 : vector<1x128xf32> to vector<16x128xf32>
      %16 = arith.addf %13, %15 : vector<16x128xf32>
      %cst_14 = arith.constant 0.000000e+00 : f32
      %17 = vector.broadcast %cst_14 : f32 to vector<16x128xf32>
      %18 = arith.maximumf %16, %17 : vector<16x128xf32>
      %19 = arith.truncf %18 : vector<16x128xf32> to vector<16x128xbf16>
      %c0_15 = arith.constant 0 : index
      %c0_16 = arith.constant 0 : index
      %20 = vector.load %arg6[%c0_15, %c0_16] : memref<16x128xbf16, #tpu.memory_space<vmem>>, vector<16x128xbf16>
      tpu.vector_store %arg6[%c0_15, %c0_16], %19 {strides = array<i32>} : memref<16x128xbf16, #tpu.memory_space<vmem>>, vector<16x128xbf16>,
    } else {
    }
    return
  }
  func.func @transform_0(%arg0: i32, %arg1: i32, %arg2: i32) -> (i32, i32) {
    %c0_i32 = arith.constant 0 : i32
    return %arg0, %arg2 : i32, i32
  }
  func.func @transform_1(%arg0: i32, %arg1: i32, %arg2: i32) -> (i32, i32) {
    %c0_i32 = arith.constant 0 : i32
    return %arg2, %arg1 : i32, i32
  }
  func.func @transform_2(%arg0: i32, %arg1: i32, %arg2: i32) -> (i32, i32) {
    %c0_i32 = arith.constant 0 : i32
    %c0_i32_0 = arith.constant 0 : i32
    return %c0_i32, %arg1 : i32, i32
  }
  func.func @transform_3(%arg0: i32, %arg1: i32, %arg2: i32) -> (i32, i32) {
    %c0_i32 = arith.constant 0 : i32
    return %arg0, %arg1 : i32, i32
  }
}

module attributes {stable_mosaic.version = 11 : i64} {
  func.func @_linear_res_ln_kernel(%arg0: i32, %arg1: i32, %arg2: memref<16x128xbf16, #tpu.memory_space<vmem>>, %arg3: memref<128x32xbf16, #tpu.memory_space<vmem>>, %arg4: memref<1x32xf32, #tpu.memory_space<vmem>>, %arg5: memref<16x32xf32, #tpu.memory_space<vmem>>, %arg6: memref<1x32xf32, #tpu.memory_space<vmem>>, %arg7: memref<1x32xf32, #tpu.memory_space<vmem>>, %arg8: memref<16x32xf32, #tpu.memory_space<vmem>>, %arg9: memref<16x32xf32, #tpu.memory_space<vmem>>) attributes {dimension_semantics = [#tpu.dimension_semantics<parallel>, #tpu.dimension_semantics<arbitrary>], iteration_bounds = array<i64: 1, 1>, scalar_prefetch = 0 : i64, scratch_operands = 1 : i64, tpu.core_type = #tpu.core_type<tc>, window_params = [{transform_indices = @transform_0, window_bounds = array<i64: 16, 128>}, {transform_indices = @transform_1, window_bounds = array<i64: 128, 32>}, {pipeline_mode = #tpu.pipeline_mode<synchronous>, transform_indices = @transform_2, window_bounds = array<i64: 1, 32>}, {transform_indices = @transform_3, window_bounds = array<i64: 16, 32>}, {pipeline_mode = #tpu.pipeline_mode<synchronous>, transform_indices = @transform_4, window_bounds = array<i64: 1, 32>}, {pipeline_mode = #tpu.pipeline_mode<synchronous>, transform_indices = @transform_5, window_bounds = array<i64: 1, 32>}, {transform_indices = @transform_6, window_bounds = array<i64: 16, 32>}]} {
    %c0_i32 = arith.constant 0 : i32
    %0 = arith.cmpi eq, %arg1, %c0_i32 : i32
    %1 = arith.extui %0 : i1 to i32
    %c0_i32_0 = arith.constant 0 : i32
    %2 = arith.cmpi ne, %1, %c0_i32_0 : i32
    scf.if %2 {
      %cst_10 = arith.constant 0.000000e+00 : f32
      %12 = vector.broadcast %cst_10 : f32 to vector<16x32xf32>
      %c0_11 = arith.constant 0 : index
      %c0_12 = arith.constant 0 : index
      %13 = vector.load %arg9[%c0_11, %c0_12] : memref<16x32xf32, #tpu.memory_space<vmem>>, vector<16x32xf32>
      tpu.vector_store %arg9[%c0_11, %c0_12], %12 {strides = array<i32>} : memref<16x32xf32, #tpu.memory_space<vmem>>, vector<16x32xf32>,
    } else {
    }
    %c0 = arith.constant 0 : index
    %c0_1 = arith.constant 0 : index
    %3 = vector.load %arg9[%c0, %c0_1] : memref<16x32xf32, #tpu.memory_space<vmem>>, vector<16x32xf32>
    %c0_2 = arith.constant 0 : index
    %c0_3 = arith.constant 0 : index
    %4 = vector.load %arg2[%c0_2, %c0_3] : memref<16x128xbf16, #tpu.memory_space<vmem>>, vector<16x128xbf16>
    %c0_4 = arith.constant 0 : index
    %c0_5 = arith.constant 0 : index
    %5 = vector.load %arg3[%c0_4, %c0_5] : memref<128x32xbf16, #tpu.memory_space<vmem>>, vector<128x32xbf16>
    %cst = arith.constant dense<0.000000e+00> : vector<16x32xf32>
    %6 = tpu.matmul %4, %5, %cst {dimension_numbers = #tpu.dot_dimension_numbers<[1], [0], [0], [1], [0, 0, 1, 1], [], []>} : vector<16x128xbf16>, vector<128x32xbf16>, vector<16x32xf32> -> vector<16x32xf32>
    %7 = arith.addf %3, %6 : vector<16x32xf32>
    %c0_6 = arith.constant 0 : index
    %c0_7 = arith.constant 0 : index
    %8 = vector.load %arg9[%c0_6, %c0_7] : memref<16x32xf32, #tpu.memory_space<vmem>>, vector<16x32xf32>
    tpu.vector_store %arg9[%c0_6, %c0_7], %7 {strides = array<i32>} : memref<16x32xf32, #tpu.memory_space<vmem>>, vector<16x32xf32>,
    %c0_i32_8 = arith.constant 0 : i32
    %9 = arith.cmpi eq, %arg1, %c0_i32_8 : i32
    %10 = arith.extui %9 : i1 to i32
    %c0_i32_9 = arith.constant 0 : i32
    %11 = arith.cmpi ne, %10, %c0_i32_9 : i32
    scf.if %11 {
      %c0_10 = arith.constant 0 : index
      %c0_11 = arith.constant 0 : index
      %12 = vector.load %arg9[%c0_10, %c0_11] : memref<16x32xf32, #tpu.memory_space<vmem>>, vector<16x32xf32>
      %c0_12 = arith.constant 0 : index
      %c0_13 = arith.constant 0 : index
      %13 = vector.load %arg4[%c0_12, %c0_13] : memref<1x32xf32, #tpu.memory_space<vmem>>, vector<1x32xf32>
      %14 = vector.broadcast %13 : vector<1x32xf32> to vector<16x32xf32>
      %15 = arith.addf %12, %14 : vector<16x32xf32>
      %c0_14 = arith.constant 0 : index
      %c0_15 = arith.constant 0 : index
      %16 = vector.load %arg5[%c0_14, %c0_15] : memref<16x32xf32, #tpu.memory_space<vmem>>, vector<16x32xf32>
      %17 = arith.addf %15, %16 : vector<16x32xf32>
      %cst_16 = arith.constant dense<0.000000e+00> : vector<16xf32>
      %18 = vector.multi_reduction <add>, %17, %cst_16 [1] : vector<16x32xf32> to vector<16xf32>
      %19 = vector.shape_cast %18 : vector<16xf32> to vector<16x1xf32>
      %cst_17 = arith.constant 3.200000e+01 : f32
      %20 = vector.broadcast %cst_17 : f32 to vector<16x1xf32>
      %21 = arith.divf %19, %20 : vector<16x1xf32>
      %22 = vector.broadcast %21 : vector<16x1xf32> to vector<16x32xf32>
      %23 = arith.subf %17, %22 : vector<16x32xf32>
      %24 = arith.mulf %23, %23 : vector<16x32xf32>
      %cst_18 = arith.constant dense<0.000000e+00> : vector<16xf32>
      %25 = vector.multi_reduction <add>, %24, %cst_18 [1] : vector<16x32xf32> to vector<16xf32>
      %26 = vector.shape_cast %25 : vector<16xf32> to vector<16x1xf32>
      %cst_19 = arith.constant 3.200000e+01 : f32
      %27 = vector.broadcast %cst_19 : f32 to vector<16x1xf32>
      %28 = arith.divf %26, %27 : vector<16x1xf32>
      %29 = vector.broadcast %21 : vector<16x1xf32> to vector<16x32xf32>
      %30 = arith.subf %17, %29 : vector<16x32xf32>
      %cst_20 = arith.constant 9.99999974E-6 : f32
      %31 = vector.broadcast %cst_20 : f32 to vector<16x1xf32>
      %32 = arith.addf %28, %31 : vector<16x1xf32>
      %33 = math.rsqrt %32 : vector<16x1xf32>
      %34 = vector.broadcast %33 : vector<16x1xf32> to vector<16x32xf32>
      %35 = arith.mulf %30, %34 : vector<16x32xf32>
      %c0_21 = arith.constant 0 : index
      %c0_22 = arith.constant 0 : index
      %36 = vector.load %arg6[%c0_21, %c0_22] : memref<1x32xf32, #tpu.memory_space<vmem>>, vector<1x32xf32>
      %37 = vector.broadcast %36 : vector<1x32xf32> to vector<16x32xf32>
      %38 = arith.mulf %35, %37 : vector<16x32xf32>
      %c0_23 = arith.constant 0 : index
      %c0_24 = arith.constant 0 : index
      %39 = vector.load %arg7[%c0_23, %c0_24] : memref<1x32xf32, #tpu.memory_space<vmem>>, vector<1x32xf32>
      %40 = vector.broadcast %39 : vector<1x32xf32> to vector<16x32xf32>
      %41 = arith.addf %38, %40 : vector<16x32xf32>
      %c0_25 = arith.constant 0 : index
      %c0_26 = arith.constant 0 : index
      %42 = vector.load %arg8[%c0_25, %c0_26] : memref<16x32xf32, #tpu.memory_space<vmem>>, vector<16x32xf32>
      tpu.vector_store %arg8[%c0_25, %c0_26], %41 {strides = array<i32>} : memref<16x32xf32, #tpu.memory_space<vmem>>, vector<16x32xf32>,
    } else {
    }
    return
  }
  func.func @transform_0(%arg0: i32, %arg1: i32) -> (i32, i32) {
    %c0_i32 = arith.constant 0 : i32
    return %arg0, %arg1 : i32, i32
  }
  func.func @transform_1(%arg0: i32, %arg1: i32) -> (i32, i32) {
    %c0_i32 = arith.constant 0 : i32
    %c0_i32_0 = arith.constant 0 : i32
    return %arg1, %c0_i32 : i32, i32
  }
  func.func @transform_2(%arg0: i32, %arg1: i32) -> (i32, i32) {
    %c0_i32 = arith.constant 0 : i32
    %c0_i32_0 = arith.constant 0 : i32
    %c0_i32_1 = arith.constant 0 : i32
    return %c0_i32, %c0_i32_0 : i32, i32
  }
  func.func @transform_3(%arg0: i32, %arg1: i32) -> (i32, i32) {
    %c0_i32 = arith.constant 0 : i32
    %c0_i32_0 = arith.constant 0 : i32
    return %arg0, %c0_i32 : i32, i32
  }
  func.func @transform_4(%arg0: i32, %arg1: i32) -> (i32, i32) {
    %c0_i32 = arith.constant 0 : i32
    %c0_i32_0 = arith.constant 0 : i32
    %c0_i32_1 = arith.constant 0 : i32
    return %c0_i32, %c0_i32_0 : i32, i32
  }
  func.func @transform_5(%arg0: i32, %arg1: i32) -> (i32, i32) {
    %c0_i32 = arith.constant 0 : i32
    %c0_i32_0 = arith.constant 0 : i32
    %c0_i32_1 = arith.constant 0 : i32
    return %c0_i32, %c0_i32_0 : i32, i32
  }
  func.func @transform_6(%arg0: i32, %arg1: i32) -> (i32, i32) {
    %c0_i32 = arith.constant 0 : i32
    %c0_i32_0 = arith.constant 0 : i32
    return %arg0, %c0_i32 : i32, i32
  }
}

module attributes {stable_mosaic.version = 11 : i64} {
  func.func @_linear_res_ln_kernel(%arg0: i32, %arg1: i32, %arg2: memref<16x128xbf16, #tpu.memory_space<vmem>>, %arg3: memref<128x32xbf16, #tpu.memory_space<vmem>>, %arg4: memref<1x32xf32, #tpu.memory_space<vmem>>, %arg5: memref<16x32xf32, #tpu.memory_space<vmem>>, %arg6: memref<1x32xf32, #tpu.memory_space<vmem>>, %arg7: memref<1x32xf32, #tpu.memory_space<vmem>>, %arg8: memref<16x32xf32, #tpu.memory_space<vmem>>, %arg9: memref<16x32xf32, #tpu.memory_space<vmem>>) attributes {dimension_semantics = [#tpu.dimension_semantics<parallel>, #tpu.dimension_semantics<arbitrary>], iteration_bounds = array<i64: 1, 1>, scalar_prefetch = 0 : i64, scratch_operands = 1 : i64, tpu.core_type = #tpu.core_type<tc>, window_params = [{transform_indices = @transform_0, window_bounds = array<i64: 16, 128>}, {transform_indices = @transform_1, window_bounds = array<i64: 128, 32>}, {pipeline_mode = #tpu.pipeline_mode<synchronous>, transform_indices = @transform_2, window_bounds = array<i64: 1, 32>}, {transform_indices = @transform_3, window_bounds = array<i64: 16, 32>}, {pipeline_mode = #tpu.pipeline_mode<synchronous>, transform_indices = @transform_4, window_bounds = array<i64: 1, 32>}, {pipeline_mode = #tpu.pipeline_mode<synchronous>, transform_indices = @transform_5, window_bounds = array<i64: 1, 32>}, {transform_indices = @transform_6, window_bounds = array<i64: 16, 32>}]} {
    %c0_i32 = arith.constant 0 : i32
    %0 = arith.cmpi eq, %arg1, %c0_i32 : i32
    %1 = arith.extui %0 : i1 to i32
    %c0_i32_0 = arith.constant 0 : i32
    %2 = arith.cmpi ne, %1, %c0_i32_0 : i32
    scf.if %2 {
      %cst_10 = arith.constant 0.000000e+00 : f32
      %12 = vector.broadcast %cst_10 : f32 to vector<16x32xf32>
      %c0_11 = arith.constant 0 : index
      %c0_12 = arith.constant 0 : index
      %13 = vector.load %arg9[%c0_11, %c0_12] : memref<16x32xf32, #tpu.memory_space<vmem>>, vector<16x32xf32>
      tpu.vector_store %arg9[%c0_11, %c0_12], %12 {strides = array<i32>} : memref<16x32xf32, #tpu.memory_space<vmem>>, vector<16x32xf32>,
    } else {
    }
    %c0 = arith.constant 0 : index
    %c0_1 = arith.constant 0 : index
    %3 = vector.load %arg9[%c0, %c0_1] : memref<16x32xf32, #tpu.memory_space<vmem>>, vector<16x32xf32>
    %c0_2 = arith.constant 0 : index
    %c0_3 = arith.constant 0 : index
    %4 = vector.load %arg2[%c0_2, %c0_3] : memref<16x128xbf16, #tpu.memory_space<vmem>>, vector<16x128xbf16>
    %c0_4 = arith.constant 0 : index
    %c0_5 = arith.constant 0 : index
    %5 = vector.load %arg3[%c0_4, %c0_5] : memref<128x32xbf16, #tpu.memory_space<vmem>>, vector<128x32xbf16>
    %cst = arith.constant dense<0.000000e+00> : vector<16x32xf32>
    %6 = tpu.matmul %4, %5, %cst {dimension_numbers = #tpu.dot_dimension_numbers<[1], [0], [0], [1], [0, 0, 1, 1], [], []>} : vector<16x128xbf16>, vector<128x32xbf16>, vector<16x32xf32> -> vector<16x32xf32>
    %7 = arith.addf %3, %6 : vector<16x32xf32>
    %c0_6 = arith.constant 0 : index
    %c0_7 = arith.constant 0 : index
    %8 = vector.load %arg9[%c0_6, %c0_7] : memref<16x32xf32, #tpu.memory_space<vmem>>, vector<16x32xf32>
    tpu.vector_store %arg9[%c0_6, %c0_7], %7 {strides = array<i32>} : memref<16x32xf32, #tpu.memory_space<vmem>>, vector<16x32xf32>,
    %c0_i32_8 = arith.constant 0 : i32
    %9 = arith.cmpi eq, %arg1, %c0_i32_8 : i32
    %10 = arith.extui %9 : i1 to i32
    %c0_i32_9 = arith.constant 0 : i32
    %11 = arith.cmpi ne, %10, %c0_i32_9 : i32
    scf.if %11 {
      %c0_10 = arith.constant 0 : index
      %c0_11 = arith.constant 0 : index
      %12 = vector.load %arg9[%c0_10, %c0_11] : memref<16x32xf32, #tpu.memory_space<vmem>>, vector<16x32xf32>
      %c0_12 = arith.constant 0 : index
      %c0_13 = arith.constant 0 : index
      %13 = vector.load %arg4[%c0_12, %c0_13] : memref<1x32xf32, #tpu.memory_space<vmem>>, vector<1x32xf32>
      %14 = vector.broadcast %13 : vector<1x32xf32> to vector<16x32xf32>
      %15 = arith.addf %12, %14 : vector<16x32xf32>
      %c0_14 = arith.constant 0 : index
      %c0_15 = arith.constant 0 : index
      %16 = vector.load %arg5[%c0_14, %c0_15] : memref<16x32xf32, #tpu.memory_space<vmem>>, vector<16x32xf32>
      %17 = arith.addf %15, %16 : vector<16x32xf32>
      %cst_16 = arith.constant dense<0.000000e+00> : vector<16xf32>
      %18 = vector.multi_reduction <add>, %17, %cst_16 [1] : vector<16x32xf32> to vector<16xf32>
      %19 = vector.shape_cast %18 : vector<16xf32> to vector<16x1xf32>
      %cst_17 = arith.constant 3.200000e+01 : f32
      %20 = vector.broadcast %cst_17 : f32 to vector<16x1xf32>
      %21 = arith.divf %19, %20 : vector<16x1xf32>
      %22 = vector.broadcast %21 : vector<16x1xf32> to vector<16x32xf32>
      %23 = arith.subf %17, %22 : vector<16x32xf32>
      %24 = arith.mulf %23, %23 : vector<16x32xf32>
      %cst_18 = arith.constant dense<0.000000e+00> : vector<16xf32>
      %25 = vector.multi_reduction <add>, %24, %cst_18 [1] : vector<16x32xf32> to vector<16xf32>
      %26 = vector.shape_cast %25 : vector<16xf32> to vector<16x1xf32>
      %cst_19 = arith.constant 3.200000e+01 : f32
      %27 = vector.broadcast %cst_19 : f32 to vector<16x1xf32>
      %28 = arith.divf %26, %27 : vector<16x1xf32>
      %29 = vector.broadcast %21 : vector<16x1xf32> to vector<16x32xf32>
      %30 = arith.subf %17, %29 : vector<16x32xf32>
      %cst_20 = arith.constant 9.99999974E-6 : f32
      %31 = vector.broadcast %cst_20 : f32 to vector<16x1xf32>
      %32 = arith.addf %28, %31 : vector<16x1xf32>
      %33 = math.rsqrt %32 : vector<16x1xf32>
      %34 = vector.broadcast %33 : vector<16x1xf32> to vector<16x32xf32>
      %35 = arith.mulf %30, %34 : vector<16x32xf32>
      %c0_21 = arith.constant 0 : index
      %c0_22 = arith.constant 0 : index
      %36 = vector.load %arg6[%c0_21, %c0_22] : memref<1x32xf32, #tpu.memory_space<vmem>>, vector<1x32xf32>
      %37 = vector.broadcast %36 : vector<1x32xf32> to vector<16x32xf32>
      %38 = arith.mulf %35, %37 : vector<16x32xf32>
      %c0_23 = arith.constant 0 : index
      %c0_24 = arith.constant 0 : index
      %39 = vector.load %arg7[%c0_23, %c0_24] : memref<1x32xf32, #tpu.memory_space<vmem>>, vector<1x32xf32>
      %40 = vector.broadcast %39 : vector<1x32xf32> to vector<16x32xf32>
      %41 = arith.addf %38, %40 : vector<16x32xf32>
      %c0_25 = arith.constant 0 : index
      %c0_26 = arith.constant 0 : index
      %42 = vector.load %arg8[%c0_25, %c0_26] : memref<16x32xf32, #tpu.memory_space<vmem>>, vector<16x32xf32>
      tpu.vector_store %arg8[%c0_25, %c0_26], %41 {strides = array<i32>} : memref<16x32xf32, #tpu.memory_space<vmem>>, vector<16x32xf32>,
    } else {
    }
    return
  }
  func.func @transform_0(%arg0: i32, %arg1: i32) -> (i32, i32) {
    %c0_i32 = arith.constant 0 : i32
    return %arg0, %arg1 : i32, i32
  }
  func.func @transform_1(%arg0: i32, %arg1: i32) -> (i32, i32) {
    %c0_i32 = arith.constant 0 : i32
    %c0_i32_0 = arith.constant 0 : i32
    return %arg1, %c0_i32 : i32, i32
  }
  func.func @transform_2(%arg0: i32, %arg1: i32) -> (i32, i32) {
    %c0_i32 = arith.constant 0 : i32
    %c0_i32_0 = arith.constant 0 : i32
    %c0_i32_1 = arith.constant 0 : i32
    return %c0_i32, %c0_i32_0 : i32, i32
  }
  func.func @transform_3(%arg0: i32, %arg1: i32) -> (i32, i32) {
    %c0_i32 = arith.constant 0 : i32
    %c0_i32_0 = arith.constant 0 : i32
    return %arg0, %c0_i32 : i32, i32
  }
  func.func @transform_4(%arg0: i32, %arg1: i32) -> (i32, i32) {
    %c0_i32 = arith.constant 0 : i32
    %c0_i32_0 = arith.constant 0 : i32
    %c0_i32_1 = arith.constant 0 : i32
    return %c0_i32, %c0_i32_0 : i32, i32
  }
  func.func @transform_5(%arg0: i32, %arg1: i32) -> (i32, i32) {
    %c0_i32 = arith.constant 0 : i32
    %c0_i32_0 = arith.constant 0 : i32
    %c0_i32_1 = arith.constant 0 : i32
    return %c0_i32, %c0_i32_0 : i32, i32
  }
  func.func @transform_6(%arg0: i32, %arg1: i32) -> (i32, i32) {
    %c0_i32 = arith.constant 0 : i32
    %c0_i32_0 = arith.constant 0 : i32
    return %arg0, %c0_i32 : i32, i32
  }
}

</mosaic_0001>

<llo_original>
// kernel: transformer_encoder.15
$region0: #{transformer_encoder.15}
  #allocation0 [shape = 'u32[]', space=smem, size = 0x4, offset = 0x4, fixed_abs, tag = 'smem constant byte address 0x4 - core index']
  #allocation1 [shape = 'u32[72,128]{1,0:T(1,128)}', space=vmem, size = 0x9000, scoped, tag = 'internal scratch']
  #allocation2 [shape = 'f32[16,32]{1,0:T(8,128)}', space=vmem, size = 0x2000, scoped, tag = 'scratch operand']
  %s0 = inlined_call_operand.vmem [shape: f32[16,4], index: 0, kind: input, shape index: {}]
  %s1 = inlined_call_operand.vmem [shape: bf16[4,32], index: 1, kind: input, shape index: {}]
  %s2 = inlined_call_operand.vmem [shape: f32[1,32], index: 2, kind: input, shape index: {}]
  %s3 = inlined_call_operand.vmem [shape: f32[16,32], index: 3, kind: output, shape index: {}]
  %s4 = sld [smem:[#allocation0]]
  $region30: #{transformer_encoder.15} parent=0
    _
  %s6 = ssub.s32 1, %s4
  %s7 = scalar_select 0, %s6, %s4
  // Predicated region
  $region2: #{transformer_encoder.15} parent=0 // pred_check
    _
  $region3: #{transformer_encoder.15} parent=0 // pred_check_branch
    %9 = sbr.rel (0) target = $region5
  $region4: #{transformer_encoder.15} parent=0 // pred_region
    _
  $region5: #{transformer_encoder.15} parent=0 // pred_fallthru
    _
  // Predicated region
  $region6: #{transformer_encoder.15} parent=0 // pred_check
    _
  $region7: #{transformer_encoder.15} parent=0 // pred_check_branch
    %11 = sbr.rel (0) target = $region9
  $region8: #{transformer_encoder.15} parent=0 // pred_region
    _
  $region9: #{transformer_encoder.15} parent=0 // pred_fallthru
    _
  // Predicated region
  $region10: #{transformer_encoder.15} parent=0 // pred_check
    _
  $region11: #{transformer_encoder.15} parent=0 // pred_check_branch
    %13 = sbr.rel (0) target = $region13
  $region12: #{transformer_encoder.15} parent=0 // pred_region
    _
  $region13: #{transformer_encoder.15} parent=0 // pred_fallthru
    _
  %p15 = scmp.eq.s32.totalorder 0, 0
  // Predicated region
  $region14: #{transformer_encoder.15} parent=0 // pred_check
    %p16 = pneg %p15
  $region15: #{transformer_encoder.15} parent=0 // pred_check_branch
    %18 = sbr.rel (%p16) target = $region17
  $region16: #{transformer_encoder.15} parent=0 // pred_region
    %vm19 = vcmask 261120
    %20 = vst.msk [vmem:[#allocation2] sm:$0xff] %vm19, 0.0
    %21 = vst.msk [vmem:[#allocation2 + $0x8] sm:$0xff] %vm19, 0.0
  $region17: #{transformer_encoder.15} parent=0 // pred_fallthru
    _
  %v22 = vld [vmem:[#allocation2] sm:$0xff]
  %v23 = vld [vmem:[#allocation2 + $0x8] sm:$0xff]
  %v24 = vld [vmem:[%s0] sm:$0xff]
  %v25 = vld [vmem:[%s0 + $0x8] sm:$0xff]
  %v26 = vpack.c.bf16 %v25, %v24
  %v27 = vld [vmem:[%s1] sm:$0x3]
  %vm28 = vcmask 31744
  %v30 = vsel %vm28, %v26, 0
  %vm32 = vcmask 1041408
  %v34 = vsel %vm32, %v27, 0
  %36 = vmatpush.bf16.msra.mxu0 0
  %37 = vmatpush.bf16.msra.mxu0 0
  %38 = vmatpush.bf16.msra.mxu0 0
  %39 = vmatpush.bf16.msra.mxu0 0
  %40 = vmatpush.bf16.msra.mxu0 0
  %41 = vmatpush.bf16.msra.mxu0 0
  %42 = vmatpush.bf16.msra.mxu0 0
  %43 = vmatpush.bf16.msra.mxu0 %v34
  %44 = vmatmul.bf16.gmra.mxu0 %v30
  %v45 = vpop.f32.mrf.mxu0
  %v46 = vadd.f32 0.0, %v45
  %v47 = vpop.f32.mrf.mxu0
  %v48 = vadd.f32 0.0, %v47
  %49 = vdwg.mxu0
  %v50 = vadd.f32 %v22, %v46
  %v51 = vadd.f32 %v23, %v48
  %vm52 = vcmask 261120
  %53 = vst.msk [vmem:[#allocation2] sm:$0xff] %vm52, %v50
  %54 = vst.msk [vmem:[#allocation2 + $0x8] sm:$0xff] %vm52, %v51
  // Predicated region
  $region18: #{transformer_encoder.15} parent=0 // pred_check
    %p55 = pneg %p15
  $region19: #{transformer_encoder.15} parent=0 // pred_check_branch
    %57 = sbr.rel (%p55) target = $region21
  $region20: #{transformer_encoder.15} parent=0 // pred_region
    %v58 = vld [vmem:[#allocation2] sm:$0xff]
    %v59 = vld [vmem:[#allocation2 + $0x8] sm:$0xff]
    %v60 = vld [vmem:[%s2] sm:$0x1]
    %v62 = vperm.slane %v60, 0
    %v64 = vadd.f32 %v58, %v62
    %v65 = vadd.f32 %v59, %v62
    %66 = vst.msk [vmem:[%s3] sm:$0xff] %vm52, %v64
    %67 = vst.msk [vmem:[%s3 + $0x8] sm:$0xff] %vm52, %v65
  $region21: #{transformer_encoder.15} parent=0 // pred_fallthru
    _
  // Predicated region
  $region22: #{transformer_encoder.15} parent=0 // pred_check
    _
  $region23: #{transformer_encoder.15} parent=0 // pred_check_branch
    %69 = sbr.rel (0) target = $region25
  $region24: #{transformer_encoder.15} parent=0 // pred_region
    _
  $region25: #{transformer_encoder.15} parent=0 // pred_fallthru
    _
  // Predicated region
  $region26: #{transformer_encoder.15} parent=0 // pred_check
    _
  $region27: #{transformer_encoder.15} parent=0 // pred_check_branch
    %71 = sbr.rel (0) target = $region29
  $region28: #{transformer_encoder.15} parent=0 // pred_region
    _
  $region29: #{transformer_encoder.15} parent=0 // pred_fallthru
    _

// kernel: transformer_encoder.18
$region0: #{transformer_encoder.18}
  #allocation0 [shape = 'u32[]', space=smem, size = 0x4, offset = 0x4, fixed_abs, tag = 'smem constant byte address 0x4 - core index']
  #allocation1 [shape = 'u32[72,128]{1,0:T(1,128)}', space=vmem, size = 0x9000, scoped, tag = 'internal scratch']
  #allocation2 [shape = 'f32[16,32]{1,0:T(8,128)}', space=vmem, size = 0x2000, scoped, tag = 'scratch operand']
  %s0 = inlined_call_operand.vmem [shape: f32[16,32], index: 0, kind: input, shape index: {}]
  %s1 = inlined_call_operand.vmem [shape: bf16[32,32], index: 1, kind: input, shape index: {}]
  %s2 = inlined_call_operand.vmem [shape: f32[1,32], index: 2, kind: input, shape index: {}]
  %s3 = inlined_call_operand.vmem [shape: bf16[16,32], index: 3, kind: output, shape index: {}]
  %s4 = sld [smem:[#allocation0]]
  $region30: #{transformer_encoder.18} parent=0
    _
  %s6 = ssub.s32 1, %s4
  %s7 = scalar_select 0, %s6, %s4
  // Predicated region
  $region2: #{transformer_encoder.18} parent=0 // pred_check
    _
  $region3: #{transformer_encoder.18} parent=0 // pred_check_branch
    %9 = sbr.rel (0) target = $region5
  $region4: #{transformer_encoder.18} parent=0 // pred_region
    _
  $region5: #{transformer_encoder.18} parent=0 // pred_fallthru
    _
  // Predicated region
  $region6: #{transformer_encoder.18} parent=0 // pred_check
    _
  $region7: #{transformer_encoder.18} parent=0 // pred_check_branch
    %11 = sbr.rel (0) target = $region9
  $region8: #{transformer_encoder.18} parent=0 // pred_region
    _
  $region9: #{transformer_encoder.18} parent=0 // pred_fallthru
    _
  // Predicated region
  $region10: #{transformer_encoder.18} parent=0 // pred_check
    _
  $region11: #{transformer_encoder.18} parent=0 // pred_check_branch
    %13 = sbr.rel (0) target = $region13
  $region12: #{transformer_encoder.18} parent=0 // pred_region
    _
  $region13: #{transformer_encoder.18} parent=0 // pred_fallthru
    _
  %p15 = scmp.eq.s32.totalorder 0, 0
  // Predicated region
  $region14: #{transformer_encoder.18} parent=0 // pred_check
    %p16 = pneg %p15
  $region15: #{transformer_encoder.18} parent=0 // pred_check_branch
    %18 = sbr.rel (%p16) target = $region17
  $region16: #{transformer_encoder.18} parent=0 // pred_region
    %vm19 = vcmask 261120
    %20 = vst.msk [vmem:[#allocation2] sm:$0xff] %vm19, 0.0
    %21 = vst.msk [vmem:[#allocation2 + $0x8] sm:$0xff] %vm19, 0.0
  $region17: #{transformer_encoder.18} parent=0 // pred_fallthru
    _
  %v22 = vld [vmem:[#allocation2] sm:$0xff]
  %v23 = vld [vmem:[#allocation2 + $0x8] sm:$0xff]
  %v24 = vld [vmem:[%s0] sm:$0xff]
  %v25 = vld [vmem:[%s0 + $0x8] sm:$0xff]
  %v26 = vpack.c.bf16 %v25, %v24
  %v27 = vld [vmem:[%s1] sm:$0xf]
  %v28 = vld [vmem:[%s1 + $0x4] sm:$0xf]
  %v29 = vld [vmem:[%s1 + $0x8] sm:$0xf]
  %v30 = vld [vmem:[%s1 + $0xc] sm:$0xf]
  %v35 = vunpack.c.l.b16 %v27
  %v36 = vunpack.c.l.b16 %v28
  %v37 = vunpack.c.l.b16 %v29
  %v38 = vunpack.c.l.b16 %v30
  %v39 = vpack.c.b16 %v36, %v35
  %v40 = vpack.c.b16 %v38, %v37
  %vm43 = vcmask 261120
  %v45 = vsel %vm43, %v26, 0
  %47 = vmatpush.bf16.msra.mxu0 0
  %48 = vmatpush.bf16.msra.mxu0 0
  %49 = vmatpush.bf16.msra.mxu0 0
  %50 = vmatpush.bf16.msra.mxu0 0
  %51 = vmatpush.bf16.msra.mxu0 0
  %52 = vmatpush.bf16.msra.mxu0 0
  %53 = vmatpush.bf16.msra.mxu0 %v40
  %54 = vmatpush.bf16.msra.mxu0 %v39
  %55 = vmatmul.bf16.gmra.mxu0 %v45
  %v56 = vpop.f32.mrf.mxu0
  %v57 = vadd.f32 0.0, %v56
  %v58 = vpop.f32.mrf.mxu0
  %v59 = vadd.f32 0.0, %v58
  %60 = vdwg.mxu0
  %v61 = vadd.f32 %v22, %v57
  %v62 = vadd.f32 %v23, %v59
  %63 = vst.msk [vmem:[#allocation2] sm:$0xff] %vm43, %v61
  %64 = vst.msk [vmem:[#allocation2 + $0x8] sm:$0xff] %vm43, %v62
  // Predicated region
  $region18: #{transformer_encoder.18} parent=0 // pred_check
    %p65 = pneg %p15
  $region19: #{transformer_encoder.18} parent=0 // pred_check_branch
    %67 = sbr.rel (%p65) target = $region21
  $region20: #{transformer_encoder.18} parent=0 // pred_region
    %v68 = vld [vmem:[#allocation2] sm:$0xff]
    %v69 = vld [vmem:[#allocation2 + $0x8] sm:$0xff]
    %v70 = vld [vmem:[%s2] sm:$0x1]
    %v72 = vperm.slane %v70, 0
    %v74 = vadd.f32 %v68, %v72
    %v75 = vadd.f32 %v69, %v72
    %v76 = vpack.c.bf16 %v74, %v74
    %v77 = vpack.c.bf16 %v75, %v75
    %vm78 = vcmask 257024
    %79 = vst.msk [vmem:[%s3] sm:$0xf] %vm78, %v76
    %80 = vst.msk [vmem:[%s3 + $0x4] sm:$0xf] %vm78, %v77
  $region21: #{transformer_encoder.18} parent=0 // pred_fallthru
    _
  // Predicated region
  $region22: #{transformer_encoder.18} parent=0 // pred_check
    _
  $region23: #{transformer_encoder.18} parent=0 // pred_check_branch
    %82 = sbr.rel (0) target = $region25
  $region24: #{transformer_encoder.18} parent=0 // pred_region
    _
  $region25: #{transformer_encoder.18} parent=0 // pred_fallthru
    _
  // Predicated region
  $region26: #{transformer_encoder.18} parent=0 // pred_check
    _
  $region27: #{transformer_encoder.18} parent=0 // pred_check_branch
    %84 = sbr.rel (0) target = $region29
  $region28: #{transformer_encoder.18} parent=0 // pred_region
    _
  $region29: #{transformer_encoder.18} parent=0 // pred_fallthru
    _

// kernel: transformer_encoder.20
$region0: #{transformer_encoder.20}
  #allocation0 [shape = 'u32[]', space=smem, size = 0x4, offset = 0x4, fixed_abs, tag = 'smem constant byte address 0x4 - core index']
  #allocation1 [shape = 'u32[72,128]{1,0:T(1,128)}', space=vmem, size = 0x9000, scoped, tag = 'internal scratch']
  #allocation2 [shape = 'f32[16,32]{1,0:T(8,128)}', space=vmem, size = 0x2000, scoped, tag = 'scratch operand']
  %s0 = inlined_call_operand.vmem [shape: bf16[16,32], index: 0, kind: input, shape index: {}]
  %s1 = inlined_call_operand.vmem [shape: bf16[32,32], index: 1, kind: input, shape index: {}]
  %s2 = inlined_call_operand.vmem [shape: f32[1,32], index: 2, kind: input, shape index: {}]
  %s3 = inlined_call_operand.vmem [shape: f32[16,32], index: 3, kind: input, shape index: {}]
  %s4 = inlined_call_operand.vmem [shape: f32[1,32], index: 4, kind: input, shape index: {}]
  %s5 = inlined_call_operand.vmem [shape: f32[1,32], index: 5, kind: input, shape index: {}]
  %s6 = inlined_call_operand.vmem [shape: f32[16,32], index: 6, kind: output, shape index: {}]
  %s7 = sld [smem:[#allocation0]]
  $region42: #{transformer_encoder.20} parent=0
    _
  %s9 = ssub.s32 1, %s7
  %s10 = scalar_select 0, %s9, %s7
  // Predicated region
  $region2: #{transformer_encoder.20} parent=0 // pred_check
    _
  $region3: #{transformer_encoder.20} parent=0 // pred_check_branch
    %12 = sbr.rel (0) target = $region5
  $region4: #{transformer_encoder.20} parent=0 // pred_region
    _
  $region5: #{transformer_encoder.20} parent=0 // pred_fallthru
    _
  // Predicated region
  $region6: #{transformer_encoder.20} parent=0 // pred_check
    _
  $region7: #{transformer_encoder.20} parent=0 // pred_check_branch
    %14 = sbr.rel (0) target = $region9
  $region8: #{transformer_encoder.20} parent=0 // pred_region
    _
  $region9: #{transformer_encoder.20} parent=0 // pred_fallthru
    _
  // Predicated region
  $region10: #{transformer_encoder.20} parent=0 // pred_check
    _
  $region11: #{transformer_encoder.20} parent=0 // pred_check_branch
    %16 = sbr.rel (0) target = $region13
  $region12: #{transformer_encoder.20} parent=0 // pred_region
    _
  $region13: #{transformer_encoder.20} parent=0 // pred_fallthru
    _
  // Predicated region
  $region14: #{transformer_encoder.20} parent=0 // pred_check
    _
  $region15: #{transformer_encoder.20} parent=0 // pred_check_branch
    %18 = sbr.rel (0) target = $region17
  $region16: #{transformer_encoder.20} parent=0 // pred_region
    _
  $region17: #{transformer_encoder.20} parent=0 // pred_fallthru
    _
  // Predicated region
  $region18: #{transformer_encoder.20} parent=0 // pred_check
    _
  $region19: #{transformer_encoder.20} parent=0 // pred_check_branch
    %20 = sbr.rel (0) target = $region21
  $region20: #{transformer_encoder.20} parent=0 // pred_region
    _
  $region21: #{transformer_encoder.20} parent=0 // pred_fallthru
    _
  // Predicated region
  $region22: #{transformer_encoder.20} parent=0 // pred_check
    _
  $region23: #{transformer_encoder.20} parent=0 // pred_check_branch
    %22 = sbr.rel (0) target = $region25
  $region24: #{transformer_encoder.20} parent=0 // pred_region
    _
  $region25: #{transformer_encoder.20} parent=0 // pred_fallthru
    _
  %p24 = scmp.eq.s32.totalorder 0, 0
  // Predicated region
  $region26: #{transformer_encoder.20} parent=0 // pred_check
    %p25 = pneg %p24
  $region27: #{transformer_encoder.20} parent=0 // pred_check_branch
    %27 = sbr.rel (%p25) target = $region29
  $region28: #{transformer_encoder.20} parent=0 // pred_region
    %vm28 = vcmask 261120
    %29 = vst.msk [vmem:[#allocation2] sm:$0xff] %vm28, 0.0
    %30 = vst.msk [vmem:[#allocation2 + $0x8] sm:$0xff] %vm28, 0.0
  $region29: #{transformer_encoder.20} parent=0 // pred_fallthru
    _
  %v31 = vld [vmem:[#allocation2] sm:$0xff]
  %v32 = vld [vmem:[#allocation2 + $0x8] sm:$0xff]
  %v33 = vld [vmem:[%s0] sm:$0xf]
  %v34 = vld [vmem:[%s0 + $0x4] sm:$0xf]
  %v35 = vld [vmem:[%s1] sm:$0xf]
  %v36 = vld [vmem:[%s1 + $0x4] sm:$0xf]
  %v37 = vld [vmem:[%s1 + $0x8] sm:$0xf]
  %v38 = vld [vmem:[%s1 + $0xc] sm:$0xf]
  %v41 = vunpack.c.l.b16 %v33
  %v42 = vunpack.c.l.b16 %v34
  %v43 = vpack.c.b16 %v42, %v41
  %v48 = vunpack.c.l.b16 %v35
  %v49 = vunpack.c.l.b16 %v36
  %v50 = vunpack.c.l.b16 %v37
  %v51 = vunpack.c.l.b16 %v38
  %v52 = vpack.c.b16 %v49, %v48
  %v53 = vpack.c.b16 %v51, %v50
  %vm56 = vcmask 261120
  %v58 = vsel %vm56, %v43, 0
  %60 = vmatpush.bf16.msra.mxu0 0
  %61 = vmatpush.bf16.msra.mxu0 0
  %62 = vmatpush.bf16.msra.mxu0 0
  %63 = vmatpush.bf16.msra.mxu0 0
  %64 = vmatpush.bf16.msra.mxu0 0
  %65 = vmatpush.bf16.msra.mxu0 0
  %66 = vmatpush.bf16.msra.mxu0 %v53
  %67 = vmatpush.bf16.msra.mxu0 %v52
  %68 = vmatmul.bf16.gmra.mxu0 %v58
  %v69 = vpop.f32.mrf.mxu0
  %v70 = vadd.f32 0.0, %v69
  %v71 = vpop.f32.mrf.mxu0
  %v72 = vadd.f32 0.0, %v71
  %73 = vdwg.mxu0
  %v74 = vadd.f32 %v31, %v70
  %v75 = vadd.f32 %v32, %v72
  %76 = vst.msk [vmem:[#allocation2] sm:$0xff] %vm56, %v74
  %77 = vst.msk [vmem:[#allocation2 + $0x8] sm:$0xff] %vm56, %v75
  // Predicated region
  $region30: #{transformer_encoder.20} parent=0 // pred_check
    %p78 = pneg %p24
  $region31: #{transformer_encoder.20} parent=0 // pred_check_branch
    %80 = sbr.rel (%p78) target = $region33
  $region32: #{transformer_encoder.20} parent=0 // pred_region
    %v81 = vld [vmem:[#allocation2] sm:$0xff]
    %v82 = vld [vmem:[#allocation2 + $0x8] sm:$0xff]
    %v83 = vld [vmem:[%s2] sm:$0x1]
    %v85 = vperm.slane %v83, 0
    %v87 = vadd.f32 %v81, %v85
    %v88 = vadd.f32 %v82, %v85
    %v89 = vld [vmem:[%s3] sm:$0xff]
    %v90 = vld [vmem:[%s3 + $0x8] sm:$0xff]
    %v91 = vadd.f32 %v87, %v89
    %v92 = vadd.f32 %v88, %v90
    %v93 = vsel %vm56, %v91, 0.0
    %94 = vadd.xlane.f32.xlu0 %v93
    %v95 = vpop.xlane.xlu0 %94
    %v96 = vsel %vm56, %v92, 0.0
    %97 = vadd.xlane.f32.xlu0 %v96
    %v98 = vpop.xlane.xlu0 %97
    %v99 = vrcp.pop 32.0
    %v100 = vmul.f32 32.0, %v99
    %v101 = vsub.f32 1.0, %v100
    %v102 = vmul.f32 %v99, %v101
    %v103 = vadd.f32 %v99, %v102
    %vm104 = vweird.f32 %v99
    %v105 = vsel %vm104, %v99, %v103
    %v106 = vmul.f32 %v95, %v105
    %v107 = vmul.f32 %v98, %v105
    %v108 = vsub.f32 %v91, %v106
    %v109 = vsub.f32 %v92, %v107
    %v110 = vmul.f32 %v108, %v108
    %v111 = vmul.f32 %v109, %v109
    %v112 = vsel %vm56, %v110, 0.0
    %113 = vadd.xlane.f32.xlu0 %v112
    %v114 = vpop.xlane.xlu0 %113
    %v115 = vsel %vm56, %v111, 0.0
    %116 = vadd.xlane.f32.xlu0 %v115
    %v117 = vpop.xlane.xlu0 %116
    %v118 = vmul.f32 %v114, %v105
    %v119 = vmul.f32 %v117, %v105
    %v120 = vadd.f32 %v118, 1e-05
    %v121 = vadd.f32 %v119, 1e-05
    %v122 = vrsqrt.pop %v120
    %v123 = vmul.f32 %v122, %v120
    %v124 = vmul.f32 %v123, %v122
    %v125 = vmul.f32 0.5, %v124
    %v126 = vsub.f32 1.5, %v125
    %v127 = vmul.f32 %v122, %v126
    %vm128 = vweird.f32 %v120
    %vm129 = vweird.f32 %v122
    %vm130 = vmor %vm128, %vm129
    %v131 = vsel %vm130, %v122, %v127
    %v132 = vrsqrt.pop %v121
    %v133 = vmul.f32 %v132, %v121
    %v134 = vmul.f32 %v133, %v132
    %v135 = vmul.f32 0.5, %v134
    %v136 = vsub.f32 1.5, %v135
    %v137 = vmul.f32 %v132, %v136
    %vm138 = vweird.f32 %v121
    %vm139 = vweird.f32 %v132
    %vm140 = vmor %vm138, %vm139
    %v141 = vsel %vm140, %v132, %v137
    %v142 = vmul.f32 %v108, %v131
    %v143 = vmul.f32 %v109, %v141
    %v144 = vld [vmem:[%s4] sm:$0x1]
    %v146 = vperm.slane %v144, 0
    %v148 = vmul.f32 %v142, %v146
    %v149 = vmul.f32 %v143, %v146
    %v150 = vld [vmem:[%s5] sm:$0x1]
    %v152 = vperm.slane %v150, 0
    %v154 = vadd.f32 %v148, %v152
    %v155 = vadd.f32 %v149, %v152
    %156 = vst.msk [vmem:[%s6] sm:$0xff] %vm56, %v154
    %157 = vst.msk [vmem:[%s6 + $0x8] sm:$0xff] %vm56, %v155
  $region33: #{transformer_encoder.20} parent=0 // pred_fallthru
    _
  // Predicated region
  $region34: #{transformer_encoder.20} parent=0 // pred_check
    _
  $region35: #{transformer_encoder.20} parent=0 // pred_check_branch
    %159 = sbr.rel (0) target = $region37
  $region36: #{transformer_encoder.20} parent=0 // pred_region
    _
  $region37: #{transformer_encoder.20} parent=0 // pred_fallthru
    _
  // Predicated region
  $region38: #{transformer_encoder.20} parent=0 // pred_check
    _
  $region39: #{transformer_encoder.20} parent=0 // pred_check_branch
    %161 = sbr.rel (0) target = $region41
  $region40: #{transformer_encoder.20} parent=0 // pred_region
    _
  $region41: #{transformer_encoder.20} parent=0 // pred_fallthru
    _

// kernel: transformer_encoder.19
$region0: #{transformer_encoder.19}
  #allocation0 [shape = 'u32[]', space=smem, size = 0x4, offset = 0x4, fixed_abs, tag = 'smem constant byte address 0x4 - core index']
  #allocation1 [shape = 'u32[72,128]{1,0:T(1,128)}', space=vmem, size = 0x9000, scoped, tag = 'internal scratch']
  #allocation2 [shape = 'f32[8,4]{1,0:T(8,128)}', space=vmem, size = 0x1000, scoped, tag = 'scratch operand']
  #allocation3 [shape = 'f32[8,4]{1,0:T(8,128)}', space=vmem, size = 0x1000, scoped, tag = 'scratch operand']
  #allocation4 [shape = 'f32[8,32]{1,0:T(8,128)}', space=vmem, size = 0x1000, scoped, tag = 'scratch operand']
  %s0 = inlined_call_operand.vmem [shape: bf16[2,8,32], index: 0, kind: input, shape index: {}]
  %s1 = inlined_call_operand.vmem [shape: bf16[2,8,32], index: 1, kind: input, shape index: {}]
  %s2 = inlined_call_operand.vmem [shape: bf16[2,8,32], index: 2, kind: input, shape index: {}]
  %s3 = inlined_call_operand.vmem [shape: f32[2,1,8], index: 3, kind: input, shape index: {}]
  %s4 = inlined_call_operand.vmem [shape: bf16[2,8,32], index: 4, kind: output, shape index: {}]
  %s5 = sld [smem:[#allocation0]]
  $region57: #{transformer_encoder.19} parent=0
    _
  %s7 = ssub.s32 1, %s5
  %s8 = scalar_select 0, %s7, %s5
  loop: start=0, step=1, limit=4
  $region2: #{transformer_encoder.19} parent=0 // loop_pre_header
    _
  $region3: #{transformer_encoder.19} parent=0 // loop_header
    %s10 = sphi 0, %s14
    %p11 = scmp.ge.s32.totalorder %s10, 4
    %s17 = sphi 0, %s36
    %s18 = sphi 0, %s32
    %s19 = sphi 0, %s28
    %s20 = sphi 0, %s17
    %s21 = sphi 0, %s18
    %s22 = sphi 0, %s19
    %s23 = sphi 0, %s20
    %s24 = sphi 0, %s21
    %s25 = sphi 0, %s22
    %s41 = sphi 0, %s43
    %s44 = sphi 0, %s41
    %s45 = sphi 0, %s44
    %s61 = sphi 0, %s45
    %s69 = sphi 0, %s71
    %s72 = sphi 0, %s69
    %s73 = sphi 0, %s72
    %s89 = sphi 0, %s73
    %s97 = sphi 0, %s99
    %s100 = sphi 0, %s97
    %s101 = sphi 0, %s100
    %s117 = sphi 0, %s101
    %s125 = sphi 0, %s127
    %s128 = sphi 0, %s125
    %s129 = sphi 0, %s128
    %s145 = sphi 0, %s129
    %s153 = sphi 0, %s155
    %s156 = sphi 0, %s153
    %s157 = sphi 0, %s156
    %s173 = sphi 0, %s157
  $region4: #{transformer_encoder.19} parent=0 // loop_header_branch
    %13 = sbr.rel (%p11) target = $region8
  $region5: #{transformer_encoder.19} parent=0 // loop_body
    %s15 = ssub.s32 %s10, 1
    %s16 = ssub.s32 %s10, 2
    %s26 = sadd.s32 1, %s19
    %p27 = scmp.ge.s32.totalorder %s26, 1
    %s28 = scalar_select %p27, 0, %s26
    %s29 = sadd.s32 1, %s18
    %s30 = scalar_select %p27, %s29, %s18
    %p31 = scmp.ge.s32.totalorder %s30, 1
    %s32 = scalar_select %p31, 0, %s30
    %s33 = sadd.s32 1, %s17
    %s34 = scalar_select %p31, %s33, %s17
    %p35 = scmp.ge.s32.totalorder %s34, 2
    %s36 = scalar_select %p35, 0, %s34
    %s37 = ssub.s32 %s17, %s36
    %s38 = ssub.s32 %s18, %s32
    %s39 = sor.u32 %s37, %s38
    %p40 = scmp.eq.s32.totalorder %s39, 0
    %s42 = sadd.s32 %s41, 1
    %s43 = scalar_select %p40, %s41, %s42
    %p46 = pneg %p40
    %p47 = scmp.eq.s32.totalorder %s10, 1
    %p48 = por %p46, %p47
    %p49 = scmp.ne.s32.totalorder %s41, %s44
    %p50 = scmp.eq.s32.totalorder %s10, 0
    %p51 = por %p49, %p50
    %p52 = scmp.ne.s32.totalorder %s41, %s44
    %p53 = scmp.eq.s32.totalorder %s15, 1
    %p54 = por %p52, %p53
    %p55 = scmp.ne.s32.totalorder %s44, %s45
    %p56 = scmp.eq.s32.totalorder %s15, 0
    %p57 = por %p55, %p56
    %p58 = scmp.ne.s32.totalorder %s44, %s45
    %p59 = scmp.eq.s32.totalorder %s16, 1
    %p60 = por %p58, %p59
    %p62 = scmp.ne.s32.totalorder %s45, %s61
    %p63 = scmp.eq.s32.totalorder %s16, 0
    %p64 = por %p62, %p63
    %s65 = ssub.s32 %s17, %s36
    %s66 = ssub.s32 %s19, %s28
    %s67 = sor.u32 %s65, %s66
    %p68 = scmp.eq.s32.totalorder %s67, 0
    %s70 = sadd.s32 %s69, 1
    %s71 = scalar_select %p68, %s69, %s70
    %p74 = pneg %p68
    %p75 = scmp.eq.s32.totalorder %s10, 1
    %p76 = por %p74, %p75
    %p77 = scmp.ne.s32.totalorder %s69, %s72
    %p78 = scmp.eq.s32.totalorder %s10, 0
    %p79 = por %p77, %p78
    %p80 = scmp.ne.s32.totalorder %s69, %s72
    %p81 = scmp.eq.s32.totalorder %s15, 1
    %p82 = por %p80, %p81
    %p83 = scmp.ne.s32.totalorder %s72, %s73
    %p84 = scmp.eq.s32.totalorder %s15, 0
    %p85 = por %p83, %p84
    %p86 = scmp.ne.s32.totalorder %s72, %s73
    %p87 = scmp.eq.s32.totalorder %s16, 1
    %p88 = por %p86, %p87
    %p90 = scmp.ne.s32.totalorder %s73, %s89
    %p91 = scmp.eq.s32.totalorder %s16, 0
    %p92 = por %p90, %p91
    %s93 = ssub.s32 %s17, %s36
    %s94 = ssub.s32 %s19, %s28
    %s95 = sor.u32 %s93, %s94
    %p96 = scmp.eq.s32.totalorder %s95, 0
    %s98 = sadd.s32 %s97, 1
    %s99 = scalar_select %p96, %s97, %s98
    %p102 = pneg %p96
    %p103 = scmp.eq.s32.totalorder %s10, 1
    %p104 = por %p102, %p103
    %p105 = scmp.ne.s32.totalorder %s97, %s100
    %p106 = scmp.eq.s32.totalorder %s10, 0
    %p107 = por %p105, %p106
    %p108 = scmp.ne.s32.totalorder %s97, %s100
    %p109 = scmp.eq.s32.totalorder %s15, 1
    %p110 = por %p108, %p109
    %p111 = scmp.ne.s32.totalorder %s100, %s101
    %p112 = scmp.eq.s32.totalorder %s15, 0
    %p113 = por %p111, %p112
    %p114 = scmp.ne.s32.totalorder %s100, %s101
    %p115 = scmp.eq.s32.totalorder %s16, 1
    %p116 = por %p114, %p115
    %p118 = scmp.ne.s32.totalorder %s101, %s117
    %p119 = scmp.eq.s32.totalorder %s16, 0
    %p120 = por %p118, %p119
    %s121 = ssub.s32 %s17, %s36
    %s122 = ssub.s32 %s19, %s28
    %s123 = sor.u32 %s121, %s122
    %p124 = scmp.eq.s32.totalorder %s123, 0
    %s126 = sadd.s32 %s125, 1
    %s127 = scalar_select %p124, %s125, %s126
    %p130 = pneg %p124
    %p131 = scmp.eq.s32.totalorder %s10, 1
    %p132 = por %p130, %p131
    %p133 = scmp.ne.s32.totalorder %s125, %s128
    %p134 = scmp.eq.s32.totalorder %s10, 0
    %p135 = por %p133, %p134
    %p136 = scmp.ne.s32.totalorder %s125, %s128
    %p137 = scmp.eq.s32.totalorder %s15, 1
    %p138 = por %p136, %p137
    %p139 = scmp.ne.s32.totalorder %s128, %s129
    %p140 = scmp.eq.s32.totalorder %s15, 0
    %p141 = por %p139, %p140
    %p142 = scmp.ne.s32.totalorder %s128, %s129
    %p143 = scmp.eq.s32.totalorder %s16, 1
    %p144 = por %p142, %p143
    %p146 = scmp.ne.s32.totalorder %s129, %s145
    %p147 = scmp.eq.s32.totalorder %s16, 0
    %p148 = por %p146, %p147
    %s149 = ssub.s32 %s17, %s36
    %s150 = ssub.s32 %s18, %s32
    %s151 = sor.u32 %s149, %s150
    %p152 = scmp.eq.s32.totalorder %s151, 0
    %s154 = sadd.s32 %s153, 1
    %s155 = scalar_select %p152, %s153, %s154
    %p158 = pneg %p152
    %p159 = scmp.eq.s32.totalorder %s10, 1
    %p160 = por %p158, %p159
    %p161 = scmp.ne.s32.totalorder %s153, %s156
    %p162 = scmp.eq.s32.totalorder %s10, 0
    %p163 = por %p161, %p162
    %p164 = scmp.ne.s32.totalorder %s153, %s156
    %p165 = scmp.eq.s32.totalorder %s15, 1
    %p166 = por %p164, %p165
    %p167 = scmp.ne.s32.totalorder %s156, %s157
    %p168 = scmp.eq.s32.totalorder %s15, 0
    %p169 = por %p167, %p168
    %p170 = scmp.ne.s32.totalorder %s156, %s157
    %p171 = scmp.eq.s32.totalorder %s16, 1
    %p172 = por %p170, %p171
    %p174 = scmp.ne.s32.totalorder %s157, %s173
    %p175 = scmp.eq.s32.totalorder %s16, 0
    %p176 = por %p174, %p175
    %p177 = scmp.le.s32.totalorder 1, %s10
    %p178 = scmp.lt.s32.totalorder %s10, 3
    %p179 = pnand %p177, %p178
    %p180 = pneg %p179
    // Predicated region
    $region9: #{transformer_encoder.19} parent=5 // pred_check
      _
    $region10: #{transformer_encoder.19} parent=5 // pred_check_branch
      %182 = sbr.rel (%p179) target = $region12
    $region11: #{transformer_encoder.19} parent=5 // pred_region
      %s183 = ssub.s32 %s10, 1
    $region12: #{transformer_encoder.19} parent=5 // pred_fallthru
      _
    %p184 = scmp.lt.s32.totalorder %s10, 2
    // Predicated region
    $region13: #{transformer_encoder.19} parent=5 // pred_check
      %p185 = pneg %p184
    $region14: #{transformer_encoder.19} parent=5 // pred_check_branch
      %187 = sbr.rel (%p185) target = $region16
    $region15: #{transformer_encoder.19} parent=5 // pred_region
      // Predicated region
      $region17: #{transformer_encoder.19} parent=15 // pred_check
        %p188 = pneg %p51
      $region18: #{transformer_encoder.19} parent=15 // pred_check_branch
        %190 = sbr.rel (%p188) target = $region20
      $region19: #{transformer_encoder.19} parent=15 // pred_region
        %p191 = scmp.lt.s32.totalorder %s17, 1
        %s192 = scalar_select %p191, %s17, 1
        %p193 = scmp.lt.s32.totalorder %s18, 0
        %s194 = scalar_select %p193, %s18, 0
        %s195 = sadd.s32 %s194, %s192
        %s196 = smul.addr %s195, 4
        %s197 = scalar_lea.vmem %s0, %s196
      $region20: #{transformer_encoder.19} parent=15 // pred_fallthru
        _
      // Predicated region
      $region21: #{transformer_encoder.19} parent=15 // pred_check
        %p198 = pneg %p79
      $region22: #{transformer_encoder.19} parent=15 // pred_check_branch
        %200 = sbr.rel (%p198) target = $region24
      $region23: #{transformer_encoder.19} parent=15 // pred_region
        %p201 = scmp.lt.s32.totalorder %s17, 1
        %s202 = scalar_select %p201, %s17, 1
        %p203 = scmp.lt.s32.totalorder %s19, 0
        %s204 = scalar_select %p203, %s19, 0
        %s205 = sadd.s32 %s204, %s202
        %s206 = smul.addr %s205, 4
        %s207 = scalar_lea.vmem %s1, %s206
      $region24: #{transformer_encoder.19} parent=15 // pred_fallthru
        _
      // Predicated region
      $region25: #{transformer_encoder.19} parent=15 // pred_check
        %p208 = pneg %p107
      $region26: #{transformer_encoder.19} parent=15 // pred_check_branch
        %210 = sbr.rel (%p208) target = $region28
      $region27: #{transformer_encoder.19} parent=15 // pred_region
        %p211 = scmp.lt.s32.totalorder %s17, 1
        %s212 = scalar_select %p211, %s17, 1
        %p213 = scmp.lt.s32.totalorder %s19, 0
        %s214 = scalar_select %p213, %s19, 0
        %s215 = sadd.s32 %s214, %s212
        %s216 = smul.addr %s215, 4
        %s217 = scalar_lea.vmem %s2, %s216
      $region28: #{transformer_encoder.19} parent=15 // pred_fallthru
        _
      // Predicated region
      $region29: #{transformer_encoder.19} parent=15 // pred_check
        %p218 = pneg %p135
      $region30: #{transformer_encoder.19} parent=15 // pred_check_branch
        %220 = sbr.rel (%p218) target = $region32
      $region31: #{transformer_encoder.19} parent=15 // pred_region
        %p221 = scmp.lt.s32.totalorder %s17, 1
        %s222 = scalar_select %p221, %s17, 1
        %p223 = scmp.lt.s32.totalorder %s19, 0
        %s224 = scalar_select %p223, %s19, 0
        %s225 = sadd.s32 %s224, %s222
        %s226 = scalar_lea.vmem %s3, %s225
      $region32: #{transformer_encoder.19} parent=15 // pred_fallthru
        _
    $region16: #{transformer_encoder.19} parent=5 // pred_fallthru
      _
    %p227 = scmp.le.s32.totalorder 1, %s10
    %p228 = scmp.lt.s32.totalorder %s10, 3
    %p229 = pnand %p227, %p228
    %p230 = pneg %p229
    // Predicated region
    $region33: #{transformer_encoder.19} parent=5 // pred_check
      _
    $region34: #{transformer_encoder.19} parent=5 // pred_check_branch
      %232 = sbr.rel (%p229) target = $region36
    $region35: #{transformer_encoder.19} parent=5 // pred_region
      %s233 = ssub.s32 %s10, 1
      %p234 = scmp.lt.s32.totalorder %s20, 1
      %s235 = scalar_select %p234, %s20, 1
      %p236 = scmp.lt.s32.totalorder %s21, 0
      %s237 = scalar_select %p236, %s21, 0
      %s238 = sadd.s32 %s237, %s235
      %s239 = smul.addr %s238, 4
      %s240 = scalar_lea.vmem %s0, %s239
      %p241 = pneg %p57
      %p242 = pneg %p54
      %p243 = scmp.lt.s32.totalorder %s20, 1
      %s244 = scalar_select %p243, %s20, 1
      %p245 = scmp.lt.s32.totalorder %s22, 0
      %s246 = scalar_select %p245, %s22, 0
      %s247 = sadd.s32 %s246, %s244
      %s248 = smul.addr %s247, 4
      %s249 = scalar_lea.vmem %s1, %s248
      %p250 = pneg %p85
      %p251 = pneg %p82
      %p252 = scmp.lt.s32.totalorder %s20, 1
      %s253 = scalar_select %p252, %s20, 1
      %p254 = scmp.lt.s32.totalorder %s22, 0
      %s255 = scalar_select %p254, %s22, 0
      %s256 = sadd.s32 %s255, %s253
      %s257 = smul.addr %s256, 4
      %s258 = scalar_lea.vmem %s2, %s257
      %p259 = pneg %p113
      %p260 = pneg %p110
      %p261 = scmp.lt.s32.totalorder %s20, 1
      %s262 = scalar_select %p261, %s20, 1
      %p263 = scmp.lt.s32.totalorder %s22, 0
      %s264 = scalar_select %p263, %s22, 0
      %s265 = sadd.s32 %s264, %s262
      %s266 = scalar_lea.vmem %s3, %s265
      %p267 = pneg %p141
      %p268 = pneg %p138
      %p269 = pneg %p169
      %p270 = pneg %p166
      %p271 = scmp.lt.s32.totalorder %s20, 1
      %s272 = scalar_select %p271, %s20, 1
      %p273 = scmp.lt.s32.totalorder %s21, 0
      %s274 = scalar_select %p273, %s21, 0
      %s275 = sadd.s32 %s274, %s272
      %s276 = smul.addr %s275, 4
      %s277 = scalar_lea.vmem %s4, %s276
      %p278 = scmp.lt.s32.totalorder %s20, 1
      %s279 = scalar_select %p278, %s20, 1
      %p280 = scmp.lt.s32.totalorder %s21, 0
      %s281 = scalar_select %p280, %s21, 0
      %s282 = sadd.s32 %s281, %s279
      %s283 = smul.addr %s282, 4
      %s284 = scalar_lea.vmem %s0, %s283
      %p285 = scmp.lt.s32.totalorder %s20, 1
      %s286 = scalar_select %p285, %s20, 1
      %p287 = scmp.lt.s32.totalorder %s22, 0
      %s288 = scalar_select %p287, %s22, 0
      %s289 = sadd.s32 %s288, %s286
      %s290 = smul.addr %s289, 4
      %s291 = scalar_lea.vmem %s1, %s290
      %p292 = scmp.lt.s32.totalorder %s20, 1
      %s293 = scalar_select %p292, %s20, 1
      %p294 = scmp.lt.s32.totalorder %s22, 0
      %s295 = scalar_select %p294, %s22, 0
      %s296 = sadd.s32 %s295, %s293
      %s297 = smul.addr %s296, 4
      %s298 = scalar_lea.vmem %s2, %s297
      %p299 = scmp.lt.s32.totalorder %s20, 1
      %s300 = scalar_select %p299, %s20, 1
      %p301 = scmp.lt.s32.totalorder %s22, 0
      %s302 = scalar_select %p301, %s22, 0
      %s303 = sadd.s32 %s302, %s300
      %s304 = scalar_lea.vmem %s3, %s303
      %p305 = scmp.lt.s32.totalorder %s20, 1
      %s306 = scalar_select %p305, %s20, 1
      %p307 = scmp.lt.s32.totalorder %s21, 0
      %s308 = scalar_select %p307, %s21, 0
      %s309 = sadd.s32 %s308, %s306
      %s310 = smul.addr %s309, 4
      %s311 = scalar_lea.vmem %s4, %s310
      %p313 = scmp.eq.s32.totalorder %s22, 0
      // Predicated region
      $region37: #{transformer_encoder.19} parent=35 // pred_check
        %p314 = pneg %p313
      $region38: #{transformer_encoder.19} parent=35 // pred_check_branch
        %316 = sbr.rel (%p314) target = $region40
      $region39: #{transformer_encoder.19} parent=35 // pred_region
        %vm317 = vcmask 31744
        %318 = vst.msk [vmem:[#allocation2] sm:$0xff] %vm317, -1e+30
        %319 = vst.msk [vmem:[#allocation3] sm:$0xff] %vm317, 0.0
        %vm320 = vcmask 261120
        %321 = vst.msk [vmem:[#allocation4] sm:$0xff] %vm320, 0.0
      $region40: #{transformer_encoder.19} parent=35 // pred_fallthru
        _
      %v322 = vld [vmem:[%s284] sm:$0xf]
      %v323 = vld [vmem:[%s291] sm:$0xf]
      %v324 = vld [vmem:[%s298] sm:$0xf]
      %v325 = vld [vmem:[%s304] sm:$0x1]
      %v327 = vperm.slane %v325, 0
      %vm329 = vcmask 64512
      %v331 = vsel %vm329, %v322, 0
      %v334 = vsel %vm329, %v323, 0
      %336 = vmatpush.bf16.xpose.msra.mxu0 0
      %337 = vmatpush.bf16.xpose.msra.mxu0 0
      %338 = vmatpush.bf16.xpose.msra.mxu0 0
      %339 = vmatpush.bf16.xpose.msra.mxu0 0
      %340 = vmatpush.bf16.xpose.msra.mxu0 0
      %341 = vmatpush.bf16.xpose.msra.mxu0 0
      %342 = vmatpush.bf16.xpose.msra.mxu0 0
      %343 = vmatpush.bf16.xpose.msra.mxu0 %v334
      %344 = vmatmul.bf16.gmra.mxu0 %v331
      %v345 = vpop.f32.mrf.mxu0
      %v346 = vadd.f32 %v327, %v345
      %v347 = vpop.f32.mrf.mxu0
      %348 = vdwg.mxu0
      %v349 = vld [vmem:[#allocation2] sm:$0xff]
      %v350 = vld [vmem:[#allocation3] sm:$0xff]
      %v351 = vsel %vm329, %v346, -inf
      %352 = vmax.xlane.f32.xlu0 %v351
      %v353 = vpop.xlane.xlu0 %352
      %v354 = vmax.f32 %v349, %v353
      %v355 = vsub.f32 %v349, %v354
      %v356 = vmul.f32 %v355, 1.442695
      %v357 = vpow.pop %v356
      %359 = vset.pattern.permute.xlu0 0
      %360 = vperm.xlu0 %359, %v354
      %v361 = vpop.permute.xlu0 %360
      %v363 = vsub.f32 %v346, %v361
      %v364 = vmul.f32 %v363, 1.442695
      %v365 = vpow.pop %v364
      %v366 = vmul.f32 %v357, %v350
      %v367 = vsel %vm329, %v365, 0.0
      %368 = vadd.xlane.f32.xlu0 %v367
      %v369 = vpop.xlane.xlu0 %368
      %v370 = vadd.f32 %v366, %v369
      %vm371 = vcmask 7168
      %372 = vst.msk [vmem:[#allocation3] sm:$0xff] %vm371, %v370
      %v373 = vld [vmem:[#allocation4] sm:$0xff]
      %375 = vset.pattern.permute.xlu0 0
      %376 = vperm.xlu0 %375, %v357
      %v377 = vpop.permute.xlu0 %376
      %v379 = vmul.f32 %v377, %v373
      %v380 = vpack.c.bf16 %v365, %v365
      %v382 = vsel %vm329, %v380, 0
      %vm384 = vcmask 1043456
      %v386 = vsel %vm384, %v324, 0
      %388 = vmatpush.bf16.msra.mxu0 0
      %389 = vmatpush.bf16.msra.mxu0 0
      %390 = vmatpush.bf16.msra.mxu0 0
      %391 = vmatpush.bf16.msra.mxu0 0
      %392 = vmatpush.bf16.msra.mxu0 0
      %393 = vmatpush.bf16.msra.mxu0 0
      %394 = vmatpush.bf16.msra.mxu0 0
      %395 = vmatpush.bf16.msra.mxu0 %v386
      %396 = vmatmul.bf16.gmra.mxu0 %v382
      %v397 = vpop.f32.mrf.mxu0
      %v398 = vadd.f32 0.0, %v397
      %v399 = vpop.f32.mrf.mxu0
      %400 = vdwg.mxu0
      %v401 = vadd.f32 %v379, %v398
      %402 = vst.msk [vmem:[#allocation4] sm:$0xff] %vm329, %v401
      %403 = vst.msk [vmem:[#allocation2] sm:$0xff] %vm371, %v354
      %v405 = vunpack.c.l.b16 %v322
      %v406 = vpack.c.b16 %v405, %v405
      %407 = vrot.lane.b32.xlu0 %v406, 120
      %v408 = vpop.permute.xlu0 %407
      %v410 = vunpack.c.l.b16 %v323
      %v411 = vpack.c.b16 %v410, %v410
      %412 = vrot.lane.b32.xlu0 %v411, 120
      %v413 = vpop.permute.xlu0 %412
      %v415 = vsel %vm329, %v408, 0
      %v418 = vsel %vm329, %v413, 0
      %420 = vmatpush.bf16.xpose.msra.mxu0 0
      %421 = vmatpush.bf16.xpose.msra.mxu0 0
      %422 = vmatpush.bf16.xpose.msra.mxu0 0
      %423 = vmatpush.bf16.xpose.msra.mxu0 0
      %424 = vmatpush.bf16.xpose.msra.mxu0 0
      %425 = vmatpush.bf16.xpose.msra.mxu0 0
      %426 = vmatpush.bf16.xpose.msra.mxu0 0
      %427 = vmatpush.bf16.xpose.msra.mxu0 %v418
      %428 = vmatmul.bf16.gmra.mxu0 %v415
      %v429 = vpop.f32.mrf.mxu0
      %v430 = vadd.f32 %v327, %v429
      %v431 = vpop.f32.mrf.mxu0
      %432 = vdwg.mxu0
      %v433 = vld [vmem:[#allocation2] sm:$0xff]
      %v434 = vld [vmem:[#allocation3] sm:$0xff]
      %v435 = vsel %vm329, %v430, -inf
      %436 = vmax.xlane.f32.xlu0 %v435
      %v437 = vpop.xlane.xlu0 %436
      %v438 = vmax.f32 %v433, %v437
      %v439 = vsub.f32 %v433, %v438
      %v440 = vmul.f32 %v439, 1.442695
      %v441 = vpow.pop %v440
      %443 = vset.pattern.permute.xlu0 1
      %444 = vperm.xlu0 %443, %v438
      %v445 = vpop.permute.xlu0 %444
      %v447 = vsub.f32 %v430, %v445
      %v448 = vmul.f32 %v447, 1.442695
      %v449 = vpow.pop %v448
      %v450 = vmul.f32 %v441, %v434
      %v451 = vsel %vm329, %v449, 0.0
      %452 = vadd.xlane.f32.xlu0 %v451
      %v453 = vpop.xlane.xlu0 %452
      %v454 = vadd.f32 %v450, %v453
      %vm455 = vcmask 15368
      %456 = vst.msk [vmem:[#allocation3] sm:$0xff] %vm455, %v454
      %v457 = vld [vmem:[#allocation4] sm:$0xff]
      %459 = vset.pattern.permute.xlu0 1
      %460 = vperm.xlu0 %459, %v441
      %v461 = vpop.permute.xlu0 %460
      %v463 = vmul.f32 %v461, %v457
      %v464 = vpack.c.bf16 %v449, %v449
      %v466 = vunpack.c.l.b16 %v324
      %v467 = vpack.c.b16 %v466, %v466
      %468 = vrot.lane.b32.xlu0 %v467, 120
      %v469 = vpop.permute.xlu0 %468
      %v471 = vsel %vm329, %v464, 0
      %v474 = vsel %vm384, %v469, 0
      %476 = vmatpush.bf16.msra.mxu0 0
      %477 = vmatpush.bf16.msra.mxu0 0
      %478 = vmatpush.bf16.msra.mxu0 0
      %479 = vmatpush.bf16.msra.mxu0 0
      %480 = vmatpush.bf16.msra.mxu0 0
      %481 = vmatpush.bf16.msra.mxu0 0
      %482 = vmatpush.bf16.msra.mxu0 0
      %483 = vmatpush.bf16.msra.mxu0 %v474
      %484 = vmatmul.bf16.gmra.mxu0 %v471
      %v485 = vpop.f32.mrf.mxu0
      %v486 = vadd.f32 0.0, %v485
      %v487 = vpop.f32.mrf.mxu0
      %488 = vdwg.mxu0
      %490 = vrot.lane.b32.xlu0 %v486, 8
      %v491 = vpop.permute.xlu0 %490
      %v493 = vadd.f32 %v463, %v491
      %vm494 = vcmask 130112
      %495 = vst.msk [vmem:[#allocation4] sm:$0xff] %vm494, %v493
      %496 = vst.msk [vmem:[#allocation2] sm:$0xff] %vm455, %v438
      %497 = vrot.lane.b32.xlu0 %v406, 112
      %v498 = vpop.permute.xlu0 %497
      %499 = vrot.lane.b32.xlu0 %v411, 112
      %v500 = vpop.permute.xlu0 %499
      %v502 = vsel %vm329, %v498, 0
      %v505 = vsel %vm329, %v500, 0
      %507 = vmatpush.bf16.xpose.msra.mxu0 0
      %508 = vmatpush.bf16.xpose.msra.mxu0 0
      %509 = vmatpush.bf16.xpose.msra.mxu0 0
      %510 = vmatpush.bf16.xpose.msra.mxu0 0
      %511 = vmatpush.bf16.xpose.msra.mxu0 0
      %512 = vmatpush.bf16.xpose.msra.mxu0 0
      %513 = vmatpush.bf16.xpose.msra.mxu0 0
      %514 = vmatpush.bf16.xpose.msra.mxu0 %v505
      %515 = vmatmul.bf16.gmra.mxu0 %v502
      %v516 = vpop.f32.mrf.mxu0
      %v517 = vadd.f32 %v327, %v516
      %v518 = vpop.f32.mrf.mxu0
      %519 = vdwg.mxu0
      %v520 = vld [vmem:[#allocation2] sm:$0xff]
      %v521 = vld [vmem:[#allocation3] sm:$0xff]
      %v522 = vsel %vm329, %v517, -inf
      %523 = vmax.xlane.f32.xlu0 %v522
      %v524 = vpop.xlane.xlu0 %523
      %v525 = vmax.f32 %v520, %v524
      %v526 = vsub.f32 %v520, %v525
      %v527 = vmul.f32 %v526, 1.442695
      %v528 = vpow.pop %v527
      %530 = vset.pattern.permute.xlu0 2
      %531 = vperm.xlu0 %530, %v525
      %v532 = vpop.permute.xlu0 %531
      %v534 = vsub.f32 %v517, %v532
      %v535 = vmul.f32 %v534, 1.442695
      %v536 = vpow.pop %v535
      %v537 = vmul.f32 %v528, %v521
      %v538 = vsel %vm329, %v536, 0.0
      %539 = vadd.xlane.f32.xlu0 %v538
      %v540 = vpop.xlane.xlu0 %539
      %v541 = vadd.f32 %v537, %v540
      %vm542 = vcmask 23568
      %543 = vst.msk [vmem:[#allocation3] sm:$0xff] %vm542, %v541
      %v544 = vld [vmem:[#allocation4] sm:$0xff]
      %546 = vset.pattern.permute.xlu0 2
      %547 = vperm.xlu0 %546, %v528
      %v548 = vpop.permute.xlu0 %547
      %v550 = vmul.f32 %v548, %v544
      %v551 = vpack.c.bf16 %v536, %v536
      %552 = vrot.lane.b32.xlu0 %v467, 112
      %v553 = vpop.permute.xlu0 %552
      %v555 = vsel %vm329, %v551, 0
      %v558 = vsel %vm384, %v553, 0
      %560 = vmatpush.bf16.msra.mxu0 0
      %561 = vmatpush.bf16.msra.mxu0 0
      %562 = vmatpush.bf16.msra.mxu0 0
      %563 = vmatpush.bf16.msra.mxu0 0
      %564 = vmatpush.bf16.msra.mxu0 0
      %565 = vmatpush.bf16.msra.mxu0 0
      %566 = vmatpush.bf16.msra.mxu0 0
      %567 = vmatpush.bf16.msra.mxu0 %v558
      %568 = vmatmul.bf16.gmra.mxu0 %v555
      %v569 = vpop.f32.mrf.mxu0
      %v570 = vadd.f32 0.0, %v569
      %v571 = vpop.f32.mrf.mxu0
      %572 = vdwg.mxu0
      %574 = vrot.lane.b32.xlu0 %v570, 16
      %v575 = vpop.permute.xlu0 %574
      %v577 = vadd.f32 %v550, %v575
      %vm578 = vcmask 195712
      %579 = vst.msk [vmem:[#allocation4] sm:$0xff] %vm578, %v577
      %580 = vst.msk [vmem:[#allocation2] sm:$0xff] %vm542, %v525
      %581 = vrot.lane.b32.xlu0 %v406, 104
      %v582 = vpop.permute.xlu0 %581
      %583 = vrot.lane.b32.xlu0 %v411, 104
      %v584 = vpop.permute.xlu0 %583
      %v586 = vsel %vm329, %v582, 0
      %v589 = vsel %vm329, %v584, 0
      %591 = vmatpush.bf16.xpose.msra.mxu0 0
      %592 = vmatpush.bf16.xpose.msra.mxu0 0
      %593 = vmatpush.bf16.xpose.msra.mxu0 0
      %594 = vmatpush.bf16.xpose.msra.mxu0 0
      %595 = vmatpush.bf16.xpose.msra.mxu0 0
      %596 = vmatpush.bf16.xpose.msra.mxu0 0
      %597 = vmatpush.bf16.xpose.msra.mxu0 0
      %598 = vmatpush.bf16.xpose.msra.mxu0 %v589
      %599 = vmatmul.bf16.gmra.mxu0 %v586
      %v600 = vpop.f32.mrf.mxu0
      %v601 = vadd.f32 %v327, %v600
      %v602 = vpop.f32.mrf.mxu0
      %603 = vdwg.mxu0
      %v604 = vld [vmem:[#allocation2] sm:$0xff]
      %v605 = vld [vmem:[#allocation3] sm:$0xff]
      %v606 = vsel %vm329, %v601, -inf
      %607 = vmax.xlane.f32.xlu0 %v606
      %v608 = vpop.xlane.xlu0 %607
      %v609 = vmax.f32 %v604, %v608
      %v610 = vsub.f32 %v604, %v609
      %v611 = vmul.f32 %v610, 1.442695
      %v612 = vpow.pop %v611
      %614 = vset.pattern.permute.xlu0 3
      %615 = vperm.xlu0 %614, %v609
      %v616 = vpop.permute.xlu0 %615
      %v618 = vsub.f32 %v601, %v616
      %v619 = vmul.f32 %v618, 1.442695
      %v620 = vpow.pop %v619
      %v621 = vmul.f32 %v612, %v605
      %v622 = vsel %vm329, %v620, 0.0
      %623 = vadd.xlane.f32.xlu0 %v622
      %v624 = vpop.xlane.xlu0 %623
      %v625 = vadd.f32 %v621, %v624
      %vm626 = vcmask 31768
      %627 = vst.msk [vmem:[#allocation3] sm:$0xff] %vm626, %v625
      %v628 = vld [vmem:[#allocation4] sm:$0xff]
      %630 = vset.pattern.permute.xlu0 3
      %631 = vperm.xlu0 %630, %v612
      %v632 = vpop.permute.xlu0 %631
      %v634 = vmul.f32 %v632, %v628
      %v635 = vpack.c.bf16 %v620, %v620
      %636 = vrot.lane.b32.xlu0 %v467, 104
      %v637 = vpop.permute.xlu0 %636
      %v639 = vsel %vm329, %v635, 0
      %v642 = vsel %vm384, %v637, 0
      %644 = vmatpush.bf16.msra.mxu0 0
      %645 = vmatpush.bf16.msra.mxu0 0
      %646 = vmatpush.bf16.msra.mxu0 0
      %647 = vmatpush.bf16.msra.mxu0 0
      %648 = vmatpush.bf16.msra.mxu0 0
      %649 = vmatpush.bf16.msra.mxu0 0
      %650 = vmatpush.bf16.msra.mxu0 0
      %651 = vmatpush.bf16.msra.mxu0 %v642
      %652 = vmatmul.bf16.gmra.mxu0 %v639
      %v653 = vpop.f32.mrf.mxu0
      %v654 = vadd.f32 0.0, %v653
      %v655 = vpop.f32.mrf.mxu0
      %656 = vdwg.mxu0
      %658 = vrot.lane.b32.xlu0 %v654, 24
      %v659 = vpop.permute.xlu0 %658
      %v661 = vadd.f32 %v634, %v659
      %vm662 = vcmask 261312
      %663 = vst.msk [vmem:[#allocation4] sm:$0xff] %vm662, %v661
      %664 = vst.msk [vmem:[#allocation2] sm:$0xff] %vm626, %v609
      // Predicated region
      $region41: #{transformer_encoder.19} parent=35 // pred_check
        %p665 = pneg %p313
      $region42: #{transformer_encoder.19} parent=35 // pred_check_branch
        %667 = sbr.rel (%p665) target = $region44
      $region43: #{transformer_encoder.19} parent=35 // pred_region
        %v668 = vld [vmem:[#allocation3] sm:$0xff]
        %v669 = vrcp.pop %v668
        %v670 = vld [vmem:[#allocation4] sm:$0xff]
        %672 = vset.pattern.permute.xlu0 0
        %673 = vperm.xlu0 %672, %v669
        %v674 = vpop.permute.xlu0 %673
        %v676 = vmul.f32 %v670, %v674
        %677 = vset.pattern.permute.xlu0 1
        %678 = vperm.xlu0 %677, %v669
        %v679 = vpop.permute.xlu0 %678
        %v681 = vmul.f32 %v670, %v679
        %682 = vset.pattern.permute.xlu0 2
        %683 = vperm.xlu0 %682, %v669
        %v684 = vpop.permute.xlu0 %683
        %v686 = vmul.f32 %v670, %v684
        %687 = vset.pattern.permute.xlu0 3
        %688 = vperm.xlu0 %687, %v669
        %v689 = vpop.permute.xlu0 %688
        %v691 = vmul.f32 %v670, %v689
        %v692 = vsel %vm329, %v676, %v681
        %vm693 = vcmask 130048
        %v694 = vsel %vm693, %v692, %v686
        %vm695 = vcmask 195584
        %v696 = vsel %vm695, %v694, %v691
        %v697 = vpack.c.bf16 %v696, %v696
        %vm698 = vcmask 257024
        %699 = vst.msk [vmem:[%s311] sm:$0xf] %vm698, %v697
      $region44: #{transformer_encoder.19} parent=35 // pred_fallthru
        _
      %p700 = scmp.lt.s32.totalorder %s20, 1
      %s701 = scalar_select %p700, %s20, 1
      %p702 = scmp.lt.s32.totalorder %s21, 0
      %s703 = scalar_select %p702, %s21, 0
      %s704 = sadd.s32 %s703, %s701
      %s705 = smul.addr %s704, 4
      %s706 = scalar_lea.vmem %s4, %s705
      // Predicated region
      $region45: #{transformer_encoder.19} parent=35 // pred_check
        %p707 = pneg %p166
      $region46: #{transformer_encoder.19} parent=35 // pred_check_branch
        %709 = sbr.rel (%p707) target = $region48
      $region47: #{transformer_encoder.19} parent=35 // pred_region
        _
      $region48: #{transformer_encoder.19} parent=35 // pred_fallthru
        _
    $region36: #{transformer_encoder.19} parent=5 // pred_fallthru
      _
    %p710 = scmp.le.s32.totalorder 2, %s10
    // Predicated region
    $region49: #{transformer_encoder.19} parent=5 // pred_check
      %p711 = pneg %p710
    $region50: #{transformer_encoder.19} parent=5 // pred_check_branch
      %713 = sbr.rel (%p711) target = $region52
    $region51: #{transformer_encoder.19} parent=5 // pred_region
      %s714 = ssub.s32 %s10, 2
      // Predicated region
      $region53: #{transformer_encoder.19} parent=51 // pred_check
        %p715 = pneg %p172
      $region54: #{transformer_encoder.19} parent=51 // pred_check_branch
        %717 = sbr.rel (%p715) target = $region56
      $region55: #{transformer_encoder.19} parent=51 // pred_region
        %p718 = scmp.lt.s32.totalorder %s23, 1
        %s719 = scalar_select %p718, %s23, 1
        %p720 = scmp.lt.s32.totalorder %s24, 0
        %s721 = scalar_select %p720, %s24, 0
        %s722 = sadd.s32 %s721, %s719
        %s723 = smul.addr %s722, 4
        %s724 = scalar_lea.vmem %s4, %s723
      $region56: #{transformer_encoder.19} parent=51 // pred_fallthru
        _
    $region52: #{transformer_encoder.19} parent=5 // pred_fallthru
      _
  $region6: #{transformer_encoder.19} parent=0 // loop_footer
    %s14 = sadd.s32 1, %s10
  $region7: #{transformer_encoder.19} parent=0 // loop_footer_branch
    %9 = sbr.rel target = $region3
  $region8: #{transformer_encoder.19} parent=0 // loop_exit
    _

// kernel: transformer_encoder.21
$region0: #{transformer_encoder.21}
  #allocation0 [shape = 'u32[]', space=smem, size = 0x4, offset = 0x4, fixed_abs, tag = 'smem constant byte address 0x4 - core index']
  #allocation1 [shape = 'u32[72,128]{1,0:T(1,128)}', space=vmem, size = 0x9000, scoped, tag = 'internal scratch']
  #allocation2 [shape = 'f32[16,128]{1,0:T(8,128)}', space=vmem, size = 0x2000, scoped, tag = 'scratch operand']
  %s0 = inlined_call_operand.vmem [shape: f32[16,32], index: 0, kind: input, shape index: {}]
  %s1 = inlined_call_operand.vmem [shape: bf16[32,128], index: 1, kind: input, shape index: {}]
  %s2 = inlined_call_operand.vmem [shape: f32[1,128], index: 2, kind: input, shape index: {}]
  %s3 = inlined_call_operand.vmem [shape: bf16[16,128], index: 3, kind: output, shape index: {}]
  %s4 = sld [smem:[#allocation0]]
  $region30: #{transformer_encoder.21} parent=0
    _
  %s6 = ssub.s32 1, %s4
  %s7 = scalar_select 0, %s6, %s4
  // Predicated region
  $region2: #{transformer_encoder.21} parent=0 // pred_check
    _
  $region3: #{transformer_encoder.21} parent=0 // pred_check_branch
    %9 = sbr.rel (0) target = $region5
  $region4: #{transformer_encoder.21} parent=0 // pred_region
    _
  $region5: #{transformer_encoder.21} parent=0 // pred_fallthru
    _
  // Predicated region
  $region6: #{transformer_encoder.21} parent=0 // pred_check
    _
  $region7: #{transformer_encoder.21} parent=0 // pred_check_branch
    %11 = sbr.rel (0) target = $region9
  $region8: #{transformer_encoder.21} parent=0 // pred_region
    _
  $region9: #{transformer_encoder.21} parent=0 // pred_fallthru
    _
  // Predicated region
  $region10: #{transformer_encoder.21} parent=0 // pred_check
    _
  $region11: #{transformer_encoder.21} parent=0 // pred_check_branch
    %13 = sbr.rel (0) target = $region13
  $region12: #{transformer_encoder.21} parent=0 // pred_region
    _
  $region13: #{transformer_encoder.21} parent=0 // pred_fallthru
    _
  %p15 = scmp.eq.s32.totalorder 0, 0
  // Predicated region
  $region14: #{transformer_encoder.21} parent=0 // pred_check
    %p16 = pneg %p15
  $region15: #{transformer_encoder.21} parent=0 // pred_check_branch
    %18 = sbr.rel (%p16) target = $region17
  $region16: #{transformer_encoder.21} parent=0 // pred_region
    %19 = vst [vmem:[#allocation2] sm:$0xff] 0.0
    %20 = vst [vmem:[#allocation2 + $0x8] sm:$0xff] 0.0
  $region17: #{transformer_encoder.21} parent=0 // pred_fallthru
    _
  %v21 = vld [vmem:[#allocation2] sm:$0xff]
  %v22 = vld [vmem:[#allocation2 + $0x8] sm:$0xff]
  %v23 = vld [vmem:[%s0] sm:$0xff]
  %v24 = vld [vmem:[%s0 + $0x8] sm:$0xff]
  %v25 = vpack.c.bf16 %v24, %v23
  %v26 = vld [vmem:[%s1] sm:$0xf]
  %v27 = vld [vmem:[%s1 + $0x4] sm:$0xf]
  %v28 = vld [vmem:[%s1 + $0x8] sm:$0xf]
  %v29 = vld [vmem:[%s1 + $0xc] sm:$0xf]
  %v34 = vunpack.c.l.b16 %v26
  %v35 = vunpack.c.l.b16 %v27
  %v36 = vunpack.c.l.b16 %v28
  %v37 = vunpack.c.l.b16 %v29
  %v38 = vpack.c.b16 %v35, %v34
  %v39 = vpack.c.b16 %v37, %v36
  %vm42 = vcmask 261120
  %v44 = vsel %vm42, %v25, 0
  %46 = vmatpush.bf16.msra.mxu0 0
  %47 = vmatpush.bf16.msra.mxu0 0
  %48 = vmatpush.bf16.msra.mxu0 0
  %49 = vmatpush.bf16.msra.mxu0 0
  %50 = vmatpush.bf16.msra.mxu0 0
  %51 = vmatpush.bf16.msra.mxu0 0
  %52 = vmatpush.bf16.msra.mxu0 %v39
  %53 = vmatpush.bf16.msra.mxu0 %v38
  %54 = vmatmul.bf16.gmra.mxu0 %v44
  %v55 = vpop.f32.mrf.mxu0
  %v56 = vadd.f32 0.0, %v55
  %v57 = vpop.f32.mrf.mxu0
  %v58 = vadd.f32 0.0, %v57
  %59 = vdwg.mxu0
  %v60 = vadd.f32 %v21, %v56
  %v61 = vadd.f32 %v22, %v58
  %62 = vst [vmem:[#allocation2] sm:$0xff] %v60
  %63 = vst [vmem:[#allocation2 + $0x8] sm:$0xff] %v61
  // Predicated region
  $region18: #{transformer_encoder.21} parent=0 // pred_check
    %p64 = pneg %p15
  $region19: #{transformer_encoder.21} parent=0 // pred_check_branch
    %66 = sbr.rel (%p64) target = $region21
  $region20: #{transformer_encoder.21} parent=0 // pred_region
    %v67 = vld [vmem:[#allocation2] sm:$0xff]
    %v68 = vld [vmem:[#allocation2 + $0x8] sm:$0xff]
    %v69 = vld [vmem:[%s2] sm:$0x1]
    %v71 = vperm.slane %v69, 0
    %v73 = vadd.f32 %v67, %v71
    %v74 = vadd.f32 %v68, %v71
    %v75 = vmax.f32 %v73, 0.0
    %v76 = vmax.f32 %v74, 0.0
    %v77 = vpack.c.bf16 %v75, %v75
    %v78 = vpack.c.bf16 %v76, %v76
    %79 = vst [vmem:[%s3] sm:$0xf] %v77
    %80 = vst [vmem:[%s3 + $0x4] sm:$0xf] %v78
  $region21: #{transformer_encoder.21} parent=0 // pred_fallthru
    _
  // Predicated region
  $region22: #{transformer_encoder.21} parent=0 // pred_check
    _
  $region23: #{transformer_encoder.21} parent=0 // pred_check_branch
    %82 = sbr.rel (0) target = $region25
  $region24: #{transformer_encoder.21} parent=0 // pred_region
    _
  $region25: #{transformer_encoder.21} parent=0 // pred_fallthru
    _
  // Predicated region
  $region26: #{transformer_encoder.21} parent=0 // pred_check
    _
  $region27: #{transformer_encoder.21} parent=0 // pred_check_branch
    %84 = sbr.rel (0) target = $region29
  $region28: #{transformer_encoder.21} parent=0 // pred_region
    _
  $region29: #{transformer_encoder.21} parent=0 // pred_fallthru
    _

// kernel: transformer_encoder.22
$region0: #{transformer_encoder.22}
  #allocation0 [shape = 'u32[]', space=smem, size = 0x4, offset = 0x4, fixed_abs, tag = 'smem constant byte address 0x4 - core index']
  #allocation1 [shape = 'u32[72,128]{1,0:T(1,128)}', space=vmem, size = 0x9000, scoped, tag = 'internal scratch']
  #allocation2 [shape = 'f32[16,32]{1,0:T(8,128)}', space=vmem, size = 0x2000, scoped, tag = 'scratch operand']
  %s0 = inlined_call_operand.vmem [shape: bf16[16,128], index: 0, kind: input, shape index: {}]
  %s1 = inlined_call_operand.vmem [shape: bf16[128,32], index: 1, kind: input, shape index: {}]
  %s2 = inlined_call_operand.vmem [shape: f32[1,32], index: 2, kind: input, shape index: {}]
  %s3 = inlined_call_operand.vmem [shape: f32[16,32], index: 3, kind: input, shape index: {}]
  %s4 = inlined_call_operand.vmem [shape: f32[1,32], index: 4, kind: input, shape index: {}]
  %s5 = inlined_call_operand.vmem [shape: f32[1,32], index: 5, kind: input, shape index: {}]
  %s6 = inlined_call_operand.vmem [shape: f32[16,32], index: 6, kind: output, shape index: {}]
  %s7 = sld [smem:[#allocation0]]
  $region42: #{transformer_encoder.22} parent=0
    _
  %s9 = ssub.s32 1, %s7
  %s10 = scalar_select 0, %s9, %s7
  // Predicated region
  $region2: #{transformer_encoder.22} parent=0 // pred_check
    _
  $region3: #{transformer_encoder.22} parent=0 // pred_check_branch
    %12 = sbr.rel (0) target = $region5
  $region4: #{transformer_encoder.22} parent=0 // pred_region
    _
  $region5: #{transformer_encoder.22} parent=0 // pred_fallthru
    _
  // Predicated region
  $region6: #{transformer_encoder.22} parent=0 // pred_check
    _
  $region7: #{transformer_encoder.22} parent=0 // pred_check_branch
    %14 = sbr.rel (0) target = $region9
  $region8: #{transformer_encoder.22} parent=0 // pred_region
    _
  $region9: #{transformer_encoder.22} parent=0 // pred_fallthru
    _
  // Predicated region
  $region10: #{transformer_encoder.22} parent=0 // pred_check
    _
  $region11: #{transformer_encoder.22} parent=0 // pred_check_branch
    %16 = sbr.rel (0) target = $region13
  $region12: #{transformer_encoder.22} parent=0 // pred_region
    _
  $region13: #{transformer_encoder.22} parent=0 // pred_fallthru
    _
  // Predicated region
  $region14: #{transformer_encoder.22} parent=0 // pred_check
    _
  $region15: #{transformer_encoder.22} parent=0 // pred_check_branch
    %18 = sbr.rel (0) target = $region17
  $region16: #{transformer_encoder.22} parent=0 // pred_region
    _
  $region17: #{transformer_encoder.22} parent=0 // pred_fallthru
    _
  // Predicated region
  $region18: #{transformer_encoder.22} parent=0 // pred_check
    _
  $region19: #{transformer_encoder.22} parent=0 // pred_check_branch
    %20 = sbr.rel (0) target = $region21
  $region20: #{transformer_encoder.22} parent=0 // pred_region
    _
  $region21: #{transformer_encoder.22} parent=0 // pred_fallthru
    _
  // Predicated region
  $region22: #{transformer_encoder.22} parent=0 // pred_check
    _
  $region23: #{transformer_encoder.22} parent=0 // pred_check_branch
    %22 = sbr.rel (0) target = $region25
  $region24: #{transformer_encoder.22} parent=0 // pred_region
    _
  $region25: #{transformer_encoder.22} parent=0 // pred_fallthru
    _
  %p23 = scmp.eq.s32.totalorder 0, 0
  // Predicated region
  $region26: #{transformer_encoder.22} parent=0 // pred_check
    %p24 = pneg %p23
  $region27: #{transformer_encoder.22} parent=0 // pred_check_branch
    %26 = sbr.rel (%p24) target = $region29
  $region28: #{transformer_encoder.22} parent=0 // pred_region
    %vm27 = vcmask 261120
    %28 = vst.msk [vmem:[#allocation2] sm:$0xff] %vm27, 0.0
    %29 = vst.msk [vmem:[#allocation2 + $0x8] sm:$0xff] %vm27, 0.0
  $region29: #{transformer_encoder.22} parent=0 // pred_fallthru
    _
  %v30 = vld [vmem:[#allocation2] sm:$0xff]
  %v31 = vld [vmem:[#allocation2 + $0x8] sm:$0xff]
  %v32 = vld [vmem:[%s0] sm:$0xf]
  %v33 = vld [vmem:[%s0 + $0x4] sm:$0xf]
  %v34 = vld [vmem:[%s1] sm:$0xf]
  %v35 = vld [vmem:[%s1 + $0x4] sm:$0xf]
  %v36 = vld [vmem:[%s1 + $0x8] sm:$0xf]
  %v37 = vld [vmem:[%s1 + $0xc] sm:$0xf]
  %v38 = vld [vmem:[%s1 + $0x10] sm:$0xf]
  %v39 = vld [vmem:[%s1 + $0x14] sm:$0xf]
  %v40 = vld [vmem:[%s1 + $0x18] sm:$0xf]
  %v41 = vld [vmem:[%s1 + $0x1c] sm:$0xf]
  %v42 = vld [vmem:[%s1 + $0x20] sm:$0xf]
  %v43 = vld [vmem:[%s1 + $0x24] sm:$0xf]
  %v44 = vld [vmem:[%s1 + $0x28] sm:$0xf]
  %v45 = vld [vmem:[%s1 + $0x2c] sm:$0xf]
  %v46 = vld [vmem:[%s1 + $0x30] sm:$0xf]
  %v47 = vld [vmem:[%s1 + $0x34] sm:$0xf]
  %v48 = vld [vmem:[%s1 + $0x38] sm:$0xf]
  %v49 = vld [vmem:[%s1 + $0x3c] sm:$0xf]
  %v52 = vunpack.c.l.b16 %v32
  %v53 = vunpack.c.l.b16 %v33
  %v54 = vpack.c.b16 %v53, %v52
  %v72 = vunpack.c.l.b16 %v34
  %v73 = vunpack.c.l.b16 %v35
  %v74 = vunpack.c.l.b16 %v36
  %v75 = vunpack.c.l.b16 %v37
  %v76 = vunpack.c.l.b16 %v38
  %v77 = vunpack.c.l.b16 %v39
  %v78 = vunpack.c.l.b16 %v40
  %v79 = vunpack.c.l.b16 %v41
  %v80 = vunpack.c.l.b16 %v42
  %v81 = vunpack.c.l.b16 %v43
  %v82 = vunpack.c.l.b16 %v44
  %v83 = vunpack.c.l.b16 %v45
  %v84 = vunpack.c.l.b16 %v46
  %v85 = vunpack.c.l.b16 %v47
  %v86 = vunpack.c.l.b16 %v48
  %v87 = vunpack.c.l.b16 %v49
  %v88 = vpack.c.b16 %v73, %v72
  %v89 = vpack.c.b16 %v75, %v74
  %v90 = vpack.c.b16 %v77, %v76
  %v91 = vpack.c.b16 %v79, %v78
  %v92 = vpack.c.b16 %v81, %v80
  %v93 = vpack.c.b16 %v83, %v82
  %v94 = vpack.c.b16 %v85, %v84
  %v95 = vpack.c.b16 %v87, %v86
  %104 = vmatpush.bf16.msra.mxu0 %v95
  %105 = vmatpush.bf16.msra.mxu0 %v94
  %106 = vmatpush.bf16.msra.mxu0 %v93
  %107 = vmatpush.bf16.msra.mxu0 %v92
  %108 = vmatpush.bf16.msra.mxu0 %v91
  %109 = vmatpush.bf16.msra.mxu0 %v90
  %110 = vmatpush.bf16.msra.mxu0 %v89
  %111 = vmatpush.bf16.msra.mxu0 %v88
  %112 = vmatmul.bf16.gmra.mxu0 %v54
  %v113 = vpop.f32.mrf.mxu0
  %v114 = vadd.f32 0.0, %v113
  %v115 = vpop.f32.mrf.mxu0
  %v116 = vadd.f32 0.0, %v115
  %117 = vdwg.mxu0
  %v118 = vadd.f32 %v30, %v114
  %v119 = vadd.f32 %v31, %v116
  %vm120 = vcmask 261120
  %121 = vst.msk [vmem:[#allocation2] sm:$0xff] %vm120, %v118
  %122 = vst.msk [vmem:[#allocation2 + $0x8] sm:$0xff] %vm120, %v119
  // Predicated region
  $region30: #{transformer_encoder.22} parent=0 // pred_check
    %p123 = pneg %p23
  $region31: #{transformer_encoder.22} parent=0 // pred_check_branch
    %125 = sbr.rel (%p123) target = $region33
  $region32: #{transformer_encoder.22} parent=0 // pred_region
    %v126 = vld [vmem:[#allocation2] sm:$0xff]
    %v127 = vld [vmem:[#allocation2 + $0x8] sm:$0xff]
    %v128 = vld [vmem:[%s2] sm:$0x1]
    %v130 = vperm.slane %v128, 0
    %v132 = vadd.f32 %v126, %v130
    %v133 = vadd.f32 %v127, %v130
    %v134 = vld [vmem:[%s3] sm:$0xff]
    %v135 = vld [vmem:[%s3 + $0x8] sm:$0xff]
    %v136 = vadd.f32 %v132, %v134
    %v137 = vadd.f32 %v133, %v135
    %v138 = vsel %vm120, %v136, 0.0
    %139 = vadd.xlane.f32.xlu0 %v138
    %v140 = vpop.xlane.xlu0 %139
    %v141 = vsel %vm120, %v137, 0.0
    %142 = vadd.xlane.f32.xlu0 %v141
    %v143 = vpop.xlane.xlu0 %142
    %v144 = vrcp.pop 32.0
    %v145 = vmul.f32 32.0, %v144
    %v146 = vsub.f32 1.0, %v145
    %v147 = vmul.f32 %v144, %v146
    %v148 = vadd.f32 %v144, %v147
    %vm149 = vweird.f32 %v144
    %v150 = vsel %vm149, %v144, %v148
    %v151 = vmul.f32 %v140, %v150
    %v152 = vmul.f32 %v143, %v150
    %v153 = vsub.f32 %v136, %v151
    %v154 = vsub.f32 %v137, %v152
    %v155 = vmul.f32 %v153, %v153
    %v156 = vmul.f32 %v154, %v154
    %v157 = vsel %vm120, %v155, 0.0
    %158 = vadd.xlane.f32.xlu0 %v157
    %v159 = vpop.xlane.xlu0 %158
    %v160 = vsel %vm120, %v156, 0.0
    %161 = vadd.xlane.f32.xlu0 %v160
    %v162 = vpop.xlane.xlu0 %161
    %v163 = vmul.f32 %v159, %v150
    %v164 = vmul.f32 %v162, %v150
    %v165 = vadd.f32 %v163, 1e-05
    %v166 = vadd.f32 %v164, 1e-05
    %v167 = vrsqrt.pop %v165
    %v168 = vmul.f32 %v167, %v165
    %v169 = vmul.f32 %v168, %v167
    %v170 = vmul.f32 0.5, %v169
    %v171 = vsub.f32 1.5, %v170
    %v172 = vmul.f32 %v167, %v171
    %vm173 = vweird.f32 %v165
    %vm174 = vweird.f32 %v167
    %vm175 = vmor %vm173, %vm174
    %v176 = vsel %vm175, %v167, %v172
    %v177 = vrsqrt.pop %v166
    %v178 = vmul.f32 %v177, %v166
    %v179 = vmul.f32 %v178, %v177
    %v180 = vmul.f32 0.5, %v179
    %v181 = vsub.f32 1.5, %v180
    %v182 = vmul.f32 %v177, %v181
    %vm183 = vweird.f32 %v166
    %vm184 = vweird.f32 %v177
    %vm185 = vmor %vm183, %vm184
    %v186 = vsel %vm185, %v177, %v182
    %v187 = vmul.f32 %v153, %v176
    %v188 = vmul.f32 %v154, %v186
    %v189 = vld [vmem:[%s4] sm:$0x1]
    %v191 = vperm.slane %v189, 0
    %v193 = vmul.f32 %v187, %v191
    %v194 = vmul.f32 %v188, %v191
    %v195 = vld [vmem:[%s5] sm:$0x1]
    %v197 = vperm.slane %v195, 0
    %v199 = vadd.f32 %v193, %v197
    %v200 = vadd.f32 %v194, %v197
    %201 = vst.msk [vmem:[%s6] sm:$0xff] %vm120, %v199
    %202 = vst.msk [vmem:[%s6 + $0x8] sm:$0xff] %vm120, %v200
  $region33: #{transformer_encoder.22} parent=0 // pred_fallthru
    _
  // Predicated region
  $region34: #{transformer_encoder.22} parent=0 // pred_check
    _
  $region35: #{transformer_encoder.22} parent=0 // pred_check_branch
    %204 = sbr.rel (0) target = $region37
  $region36: #{transformer_encoder.22} parent=0 // pred_region
    _
  $region37: #{transformer_encoder.22} parent=0 // pred_fallthru
    _
  // Predicated region
  $region38: #{transformer_encoder.22} parent=0 // pred_check
    _
  $region39: #{transformer_encoder.22} parent=0 // pred_check_branch
    %206 = sbr.rel (0) target = $region41
  $region40: #{transformer_encoder.22} parent=0 // pred_region
    _
  $region41: #{transformer_encoder.22} parent=0 // pred_fallthru
    _

// kernel: transformer_encoder.29
$region0: #{transformer_encoder.29}
  #allocation0 [shape = 'u32[]', space=smem, size = 0x4, offset = 0x4, fixed_abs, tag = 'smem constant byte address 0x4 - core index']
  #allocation1 [shape = 'u32[72,128]{1,0:T(1,128)}', space=vmem, size = 0x9000, scoped, tag = 'internal scratch']
  #allocation2 [shape = 'f32[16,32]{1,0:T(8,128)}', space=vmem, size = 0x2000, scoped, tag = 'scratch operand']
  %s0 = inlined_call_operand.vmem [shape: bf16[16,128], index: 0, kind: input, shape index: {}]
  %s1 = inlined_call_operand.vmem [shape: bf16[128,32], index: 1, kind: input, shape index: {}]
  %s2 = inlined_call_operand.vmem [shape: f32[1,32], index: 2, kind: input, shape index: {}]
  %s3 = inlined_call_operand.vmem [shape: f32[16,32], index: 3, kind: input, shape index: {}]
  %s4 = inlined_call_operand.vmem [shape: f32[1,32], index: 4, kind: input, shape index: {}]
  %s5 = inlined_call_operand.vmem [shape: f32[1,32], index: 5, kind: input, shape index: {}]
  %s6 = inlined_call_operand.hbm [shape: f32[16,32], index: 6, kind: output, shape index: {}]
  %s7 = sld [smem:[#allocation0]]
  $region42: #{transformer_encoder.29} parent=0
    _
  %s9 = ssub.s32 1, %s7
  %s10 = scalar_select 0, %s9, %s7
  $region1: #{transformer_encoder.29} parent=0
    #allocation3 [shape = 'u8[8192]{0}', space=vmem, size = 0x2000, scoped, tag = 'output window, operand 0, single buffered']
    #allocation4 [shape = 's32[1]{0}', space=sflag, size = 0x4, scoped, tag = 'scoped memory for transformer_encoder.29']
    %11 = vsyncpa [#allocation4], 0
    // Predicated region
    $region2: #{transformer_encoder.29} parent=1 // pred_check
      _
    $region3: #{transformer_encoder.29} parent=1 // pred_check_branch
      %13 = sbr.rel (0) target = $region5
    $region4: #{transformer_encoder.29} parent=1 // pred_region
      _
    $region5: #{transformer_encoder.29} parent=1 // pred_fallthru
      _
    // Predicated region
    $region6: #{transformer_encoder.29} parent=1 // pred_check
      _
    $region7: #{transformer_encoder.29} parent=1 // pred_check_branch
      %15 = sbr.rel (0) target = $region9
    $region8: #{transformer_encoder.29} parent=1 // pred_region
      _
    $region9: #{transformer_encoder.29} parent=1 // pred_fallthru
      _
    // Predicated region
    $region10: #{transformer_encoder.29} parent=1 // pred_check
      _
    $region11: #{transformer_encoder.29} parent=1 // pred_check_branch
      %17 = sbr.rel (0) target = $region13
    $region12: #{transformer_encoder.29} parent=1 // pred_region
      _
    $region13: #{transformer_encoder.29} parent=1 // pred_fallthru
      _
    // Predicated region
    $region14: #{transformer_encoder.29} parent=1 // pred_check
      _
    $region15: #{transformer_encoder.29} parent=1 // pred_check_branch
      %19 = sbr.rel (0) target = $region17
    $region16: #{transformer_encoder.29} parent=1 // pred_region
      _
    $region17: #{transformer_encoder.29} parent=1 // pred_fallthru
      _
    // Predicated region
    $region18: #{transformer_encoder.29} parent=1 // pred_check
      _
    $region19: #{transformer_encoder.29} parent=1 // pred_check_branch
      %21 = sbr.rel (0) target = $region21
    $region20: #{transformer_encoder.29} parent=1 // pred_region
      _
    $region21: #{transformer_encoder.29} parent=1 // pred_fallthru
      _
    // Predicated region
    $region22: #{transformer_encoder.29} parent=1 // pred_check
      _
    $region23: #{transformer_encoder.29} parent=1 // pred_check_branch
      %23 = sbr.rel (0) target = $region25
    $region24: #{transformer_encoder.29} parent=1 // pred_region
      _
    $region25: #{transformer_encoder.29} parent=1 // pred_fallthru
      _
    %p24 = scmp.eq.s32.totalorder 0, 0
    // Predicated region
    $region26: #{transformer_encoder.29} parent=1 // pred_check
      %p25 = pneg %p24
    $region27: #{transformer_encoder.29} parent=1 // pred_check_branch
      %27 = sbr.rel (%p25) target = $region29
    $region28: #{transformer_encoder.29} parent=1 // pred_region
      %vm28 = vcmask 261120
      %29 = vst.msk [vmem:[#allocation2] sm:$0xff] %vm28, 0.0
      %30 = vst.msk [vmem:[#allocation2 + $0x8] sm:$0xff] %vm28, 0.0
    $region29: #{transformer_encoder.29} parent=1 // pred_fallthru
      _
    %v31 = vld [vmem:[#allocation2] sm:$0xff]
    %v32 = vld [vmem:[#allocation2 + $0x8] sm:$0xff]
    %v33 = vld [vmem:[%s0] sm:$0xf]
    %v34 = vld [vmem:[%s0 + $0x4] sm:$0xf]
    %v35 = vld [vmem:[%s1] sm:$0xf]
    %v36 = vld [vmem:[%s1 + $0x4] sm:$0xf]
    %v37 = vld [vmem:[%s1 + $0x8] sm:$0xf]
    %v38 = vld [vmem:[%s1 + $0xc] sm:$0xf]
    %v39 = vld [vmem:[%s1 + $0x10] sm:$0xf]
    %v40 = vld [vmem:[%s1 + $0x14] sm:$0xf]
    %v41 = vld [vmem:[%s1 + $0x18] sm:$0xf]
    %v42 = vld [vmem:[%s1 + $0x1c] sm:$0xf]
    %v43 = vld [vmem:[%s1 + $0x20] sm:$0xf]
    %v44 = vld [vmem:[%s1 + $0x24] sm:$0xf]
    %v45 = vld [vmem:[%s1 + $0x28] sm:$0xf]
    %v46 = vld [vmem:[%s1 + $0x2c] sm:$0xf]
    %v47 = vld [vmem:[%s1 + $0x30] sm:$0xf]
    %v48 = vld [vmem:[%s1 + $0x34] sm:$0xf]
    %v49 = vld [vmem:[%s1 + $0x38] sm:$0xf]
    %v50 = vld [vmem:[%s1 + $0x3c] sm:$0xf]
    %v53 = vunpack.c.l.b16 %v33
    %v54 = vunpack.c.l.b16 %v34
    %v55 = vpack.c.b16 %v54, %v53
    %v73 = vunpack.c.l.b16 %v35
    %v74 = vunpack.c.l.b16 %v36
    %v75 = vunpack.c.l.b16 %v37
    %v76 = vunpack.c.l.b16 %v38
    %v77 = vunpack.c.l.b16 %v39
    %v78 = vunpack.c.l.b16 %v40
    %v79 = vunpack.c.l.b16 %v41
    %v80 = vunpack.c.l.b16 %v42
    %v81 = vunpack.c.l.b16 %v43
    %v82 = vunpack.c.l.b16 %v44
    %v83 = vunpack.c.l.b16 %v45
    %v84 = vunpack.c.l.b16 %v46
    %v85 = vunpack.c.l.b16 %v47
    %v86 = vunpack.c.l.b16 %v48
    %v87 = vunpack.c.l.b16 %v49
    %v88 = vunpack.c.l.b16 %v50
    %v89 = vpack.c.b16 %v74, %v73
    %v90 = vpack.c.b16 %v76, %v75
    %v91 = vpack.c.b16 %v78, %v77
    %v92 = vpack.c.b16 %v80, %v79
    %v93 = vpack.c.b16 %v82, %v81
    %v94 = vpack.c.b16 %v84, %v83
    %v95 = vpack.c.b16 %v86, %v85
    %v96 = vpack.c.b16 %v88, %v87
    %105 = vmatpush.bf16.msra.mxu0 %v96
    %106 = vmatpush.bf16.msra.mxu0 %v95
    %107 = vmatpush.bf16.msra.mxu0 %v94
    %108 = vmatpush.bf16.msra.mxu0 %v93
    %109 = vmatpush.bf16.msra.mxu0 %v92
    %110 = vmatpush.bf16.msra.mxu0 %v91
    %111 = vmatpush.bf16.msra.mxu0 %v90
    %112 = vmatpush.bf16.msra.mxu0 %v89
    %113 = vmatmul.bf16.gmra.mxu0 %v55
    %v114 = vpop.f32.mrf.mxu0
    %v115 = vadd.f32 0.0, %v114
    %v116 = vpop.f32.mrf.mxu0
    %v117 = vadd.f32 0.0, %v116
    %118 = vdwg.mxu0
    %v119 = vadd.f32 %v31, %v115
    %v120 = vadd.f32 %v32, %v117
    %vm121 = vcmask 261120
    %122 = vst.msk [vmem:[#allocation2] sm:$0xff] %vm121, %v119
    %123 = vst.msk [vmem:[#allocation2 + $0x8] sm:$0xff] %vm121, %v120
    // Predicated region
    $region30: #{transformer_encoder.29} parent=1 // pred_check
      %p124 = pneg %p24
    $region31: #{transformer_encoder.29} parent=1 // pred_check_branch
      %126 = sbr.rel (%p124) target = $region33
    $region32: #{transformer_encoder.29} parent=1 // pred_region
      %v127 = vld [vmem:[#allocation2] sm:$0xff]
      %v128 = vld [vmem:[#allocation2 + $0x8] sm:$0xff]
      %v129 = vld [vmem:[%s2] sm:$0x1]
      %v131 = vperm.slane %v129, 0
      %v133 = vadd.f32 %v127, %v131
      %v134 = vadd.f32 %v128, %v131
      %v135 = vld [vmem:[%s3] sm:$0xff]
      %v136 = vld [vmem:[%s3 + $0x8] sm:$0xff]
      %v137 = vadd.f32 %v133, %v135
      %v138 = vadd.f32 %v134, %v136
      %v139 = vsel %vm121, %v137, 0.0
      %140 = vadd.xlane.f32.xlu0 %v139
      %v141 = vpop.xlane.xlu0 %140
      %v142 = vsel %vm121, %v138, 0.0
      %143 = vadd.xlane.f32.xlu0 %v142
      %v144 = vpop.xlane.xlu0 %143
      %v145 = vrcp.pop 32.0
      %v146 = vmul.f32 32.0, %v145
      %v147 = vsub.f32 1.0, %v146
      %v148 = vmul.f32 %v145, %v147
      %v149 = vadd.f32 %v145, %v148
      %vm150 = vweird.f32 %v145
      %v151 = vsel %vm150, %v145, %v149
      %v152 = vmul.f32 %v141, %v151
      %v153 = vmul.f32 %v144, %v151
      %v154 = vsub.f32 %v137, %v152
      %v155 = vsub.f32 %v138, %v153
      %v156 = vmul.f32 %v154, %v154
      %v157 = vmul.f32 %v155, %v155
      %v158 = vsel %vm121, %v156, 0.0
      %159 = vadd.xlane.f32.xlu0 %v158
      %v160 = vpop.xlane.xlu0 %159
      %v161 = vsel %vm121, %v157, 0.0
      %162 = vadd.xlane.f32.xlu0 %v161
      %v163 = vpop.xlane.xlu0 %162
      %v164 = vmul.f32 %v160, %v151
      %v165 = vmul.f32 %v163, %v151
      %v166 = vadd.f32 %v164, 1e-05
      %v167 = vadd.f32 %v165, 1e-05
      %v168 = vrsqrt.pop %v166
      %v169 = vmul.f32 %v168, %v166
      %v170 = vmul.f32 %v169, %v168
      %v171 = vmul.f32 0.5, %v170
      %v172 = vsub.f32 1.5, %v171
      %v173 = vmul.f32 %v168, %v172
      %vm174 = vweird.f32 %v166
      %vm175 = vweird.f32 %v168
      %vm176 = vmor %vm174, %vm175
      %v177 = vsel %vm176, %v168, %v173
      %v178 = vrsqrt.pop %v167
      %v179 = vmul.f32 %v178, %v167
      %v180 = vmul.f32 %v179, %v178
      %v181 = vmul.f32 0.5, %v180
      %v182 = vsub.f32 1.5, %v181
      %v183 = vmul.f32 %v178, %v182
      %vm184 = vweird.f32 %v167
      %vm185 = vweird.f32 %v178
      %vm186 = vmor %vm184, %vm185
      %v187 = vsel %vm186, %v178, %v183
      %v188 = vmul.f32 %v154, %v177
      %v189 = vmul.f32 %v155, %v187
      %v190 = vld [vmem:[%s4] sm:$0x1]
      %v192 = vperm.slane %v190, 0
      %v194 = vmul.f32 %v188, %v192
      %v195 = vmul.f32 %v189, %v192
      %v196 = vld [vmem:[%s5] sm:$0x1]
      %v198 = vperm.slane %v196, 0
      %v200 = vadd.f32 %v194, %v198
      %v201 = vadd.f32 %v195, %v198
      %202 = vst.msk [vmem:[#allocation3] sm:$0xff] %vm121, %v200
      %203 = vst.msk [vmem:[#allocation3 + $0x8] sm:$0xff] %vm121, %v201
    $region33: #{transformer_encoder.29} parent=1 // pred_fallthru
      _
    // Predicated region
    $region34: #{transformer_encoder.29} parent=1 // pred_check
      _
    $region35: #{transformer_encoder.29} parent=1 // pred_check_branch
      %205 = sbr.rel (0) target = $region37
    $region36: #{transformer_encoder.29} parent=1 // pred_region
      %207 = vsyncadd [#allocation4], 0
      %s208 = sshll.u32 [#allocation3], 4
      %s209 = int_to_ptr.vmem [resolvable:$true] %s208
      %s210 = sshll.u32 %s6, 4
      %s211 = int_to_ptr.hbm [resolvable:$true] %s210
      %216 = dma.vmem_to_hbm [thread:$0]  %s209, 256, %s211, [#allocation4], 128, 128, 8
    $region37: #{transformer_encoder.29} parent=1 // pred_fallthru
      _
    // Predicated region
    $region38: #{transformer_encoder.29} parent=1 // pred_check
      _
    $region39: #{transformer_encoder.29} parent=1 // pred_check_branch
      %218 = sbr.rel (0) target = $region41
    $region40: #{transformer_encoder.29} parent=1 // pred_region
      %220 = dma.done [#allocation4], 256
    $region41: #{transformer_encoder.29} parent=1 // pred_fallthru
      _
    %221 = vsyncpa [#allocation4], 1

</llo_original>
